<compile_context>
chip_gen: v5e
topology: v5e:2x2
jax: 0.10.0
libtpu: 0.0.40
codegen_flags: <defaults>
</compile_context>

<pallas_src>
import jax
import jax.numpy as jnp
import numpy as np
from jax.experimental import pallas as pl
from jax.experimental.pallas import tpu as pltpu


def pooling_encoder_kernel(xc_ref, yc_ref, w1_ref, wstack_ref, bstack_ref,
                           o_ref):
    rows = xc_ref.shape[0]          # tb * N rows for tb batch elements
    tb = o_ref.shape[0]             # batch elements in this block
    n = rows // tb                  # set size N (static)

    w1 = w1_ref[...]                # (dim_x + dim_y, H) f32
    b = bstack_ref[...]             # (6, H) f32

    # --- pre-MLP layer 1 on the VPU (K = 2 is pure overhead on the MXU) ---
    dx = xc_ref.shape[1]
    dy = yc_ref.shape[1]
    h = b[0:1, :]                                         # (1, H) broadcasts up
    for d in range(dx):                                   # static unroll (dim_x = 1)
        h = h + xc_ref[:, d:d + 1] * w1[d:d + 1, :]
    for d in range(dy):                                   # static unroll (dim_y = 1)
        h = h + yc_ref[:, d:d + 1] * w1[dx + d:dx + d + 1, :]
    h = jnp.maximum(h, 0.0)                               # (rows, H) f32

    # --- pre-MLP layers 2..3 on the MXU (bf16 operands, f32 accumulation) ---
    h = jnp.dot(h.astype(jnp.bfloat16), wstack_ref[0],
                preferred_element_type=jnp.float32) + b[1:2, :]
    h = jnp.maximum(h, 0.0)
    h = jnp.dot(h.astype(jnp.bfloat16), wstack_ref[1],
                preferred_element_type=jnp.float32) + b[2:3, :]
    h = jnp.maximum(h, 0.0)

    # --- mean pooling, hoisted ABOVE the (purely linear) pre-MLP layer 4 ---
    # pool is a (tb, rows) block-diagonal 0/1 selector (sum over each set);
    # the 1/N mean scale was folded into w4 (= wstack_ref[2]) in the wrapper.
    col = jax.lax.broadcasted_iota(jnp.int32, (tb, rows), 1)
    row = jax.lax.broadcasted_iota(jnp.int32, (tb, rows), 0)
    lo = row * n
    pool = jnp.where(jnp.logical_and(col >= lo, col < lo + n),
                     1.0, 0.0).astype(jnp.bfloat16)
    m = jnp.dot(pool, h.astype(jnp.bfloat16),
                preferred_element_type=jnp.float32)       # (tb, H)

    # --- pre-MLP layer 4 (no activation), now on pooled activations only ---
    m = jnp.dot(m.astype(jnp.bfloat16), wstack_ref[2],
                preferred_element_type=jnp.float32) + b[3:4, :]

    # --- post-MLP: Linear -> ReLU -> Linear ---
    p = jnp.maximum(
        jnp.dot(m.astype(jnp.bfloat16), wstack_ref[3],
                preferred_element_type=jnp.float32) + b[4:5, :], 0.0)
    o_ref[...] = jnp.dot(p.astype(jnp.bfloat16), wstack_ref[4],
                         preferred_element_type=jnp.float32) + b[5:6, :]


def _default_tb(B):
    """One grid step per TensorCore: 1 TC on v5e/v6e, 2 TCs on v7x."""
    n_tc = 1
    try:
        kind = jax.devices()[0].device_kind.lower()
        if "v7" in kind or "7x" in kind:
            n_tc = 2
    except Exception:
        pass
    return max(1, pl.cdiv(B, n_tc))


def pooling_encoder_pallas(xc, yc, params, *, tb=None):
    """xc: (B, N, dim_x), yc: (B, N, dim_y); params: list of 6 (w, b) pairs."""
    B, N, dim_x = xc.shape
    dim_y = yc.shape[-1]
    (w1, b1), (w2, b2), (w3, b3), (w4, b4), (w5, b5), (w6, b6) = params
    H = w2.shape[0]

    if tb is None:
        tb = _default_tb(B)
    tb = min(tb, B)

    bp = pl.cdiv(B, tb) * tb
    if bp != B:                       # pad batch only if tb doesn't divide B
        xc = jnp.pad(xc, ((0, bp - B), (0, 0), (0, 0)))
        yc = jnp.pad(yc, ((0, bp - B), (0, 0), (0, 0)))

    # Flatten (batch, set) -> rows; a dim-collapse, no concat / HBM shuffle.
    xc_flat = xc.reshape(bp * N, dim_x)
    yc_flat = yc.reshape(bp * N, dim_y)

    # Weight slabs: layers 2..6 as one bf16 (5,H,H) slab (single DMA, MXU-native
    # dtype).  w4 absorbs the 1/N mean-pool scale (pool is a 0/1 selector in the
    # kernel).  Biases stay f32 and are added to the f32 accumulators.
    w_stack = jnp.stack([w2, w3, w4 / N, w5, w6]).astype(jnp.bfloat16)
    b_stack = jnp.concatenate([b1, b2, b3, b4, b5, b6], 0).astype(jnp.float32)
    w1f = w1.astype(jnp.float32)      # layer 1 runs on the VPU in f32

    rows = tb * N
    grid = (bp // tb,)

    out = pl.pallas_call(
        pooling_encoder_kernel,
        out_shape=jax.ShapeDtypeStruct((bp, H), jnp.float32),
        grid_spec=pltpu.PrefetchScalarGridSpec(
            num_scalar_prefetch=0,
            grid=grid,
            in_specs=[
                pl.BlockSpec((rows, dim_x), lambda i: (i, 0)),
                pl.BlockSpec((rows, dim_y), lambda i: (i, 0)),
                pl.BlockSpec(w1f.shape, lambda i: (0, 0)),
                pl.BlockSpec(w_stack.shape, lambda i: (0, 0, 0)),
                pl.BlockSpec(b_stack.shape, lambda i: (0, 0)),
            ],
            out_specs=pl.BlockSpec((tb, H), lambda i: (i, 0)),
        ),
        compiler_params=pltpu.CompilerParams(
            dimension_semantics=("parallel",)),
    )(xc_flat, yc_flat, w1f, w_stack, b_stack)
    return out[:B]


def init_linear(key, fan_in, fan_out):
    """Deterministic PyTorch-style uniform(-1/sqrt(fan_in), 1/sqrt(fan_in))."""
    kw, kb = jax.random.split(key)
    bound = 1.0 / np.sqrt(fan_in)
    w = jax.random.uniform(kw, (fan_in, fan_out), jnp.float32, -bound, bound)
    b = jax.random.uniform(kb, (1, fan_out), jnp.float32, -bound, bound)
    return w, b


def reference_forward(xc, yc, params):
    """Pure-JAX f32 reference of PoolingEncoder.forward (mask=None, use_lat=False)."""
    (w1, b1), (w2, b2), (w3, b3), (w4, b4), (w5, b5), (w6, b6) = params
    h = jnp.concatenate([xc, yc], -1)
    h = jnp.maximum(h @ w1 + b1, 0.0)
    h = jnp.maximum(h @ w2 + b2, 0.0)
    h = jnp.maximum(h @ w3 + b3, 0.0)
    h = h @ w4 + b4
    m = h.mean(-2)
    p = jnp.maximum(m @ w5 + b5, 0.0)
    return p @ w6 + b6


if __name__ == "__main__":
    # Shapes consistent with the module defaults (set size 8, hidden 128).
    B, N = 64, 8
    dim_x, dim_y, dim_hid = 1, 1, 128
    dim_in = dim_x + dim_y

    key = jax.random.PRNGKey(0)
    k_x, k_y, k1, k2, k3, k4, k5, k6 = jax.random.split(key, 8)

    xc = jax.random.normal(k_x, (B, N, dim_x), jnp.float32)
    yc = jax.random.normal(k_y, (B, N, dim_y), jnp.float32)

    params = [
        init_linear(k1, dim_in, dim_hid),    # pre  L1
        init_linear(k2, dim_hid, dim_hid),   # pre  L2
        init_linear(k3, dim_hid, dim_hid),   # pre  L3
        init_linear(k4, dim_hid, dim_hid),   # pre  L4
        init_linear(k5, dim_hid, dim_hid),   # post L1
        init_linear(k6, dim_hid, dim_hid),   # post L2
    ]

    out = pooling_encoder_pallas(xc, yc, params)
    out = jax.block_until_ready(out)

    # Tolerance loosened vs. the pure-f32 check: the kernel runs the layer-2..6
    # matmuls with bf16 operands (f32 accumulation) on the MXU.
    ref = reference_forward(xc, yc, params)
    np.testing.assert_allclose(np.asarray(out), np.asarray(ref),
                               rtol=2e-2, atol=1e-2)

    print("KERNEL_OK")
</pallas_src>

<mosaic_0001>
module attributes {stable_mosaic.version = 11 : i64} {
  func.func @pooling_encoder_kernel(%arg0: i32, %arg1: memref<512x1xf32, #tpu.memory_space<vmem>>, %arg2: memref<512x1xf32, #tpu.memory_space<vmem>>, %arg3: memref<2x128xf32, #tpu.memory_space<vmem>>, %arg4: memref<5x128x128xbf16, #tpu.memory_space<vmem>>, %arg5: memref<6x128xf32, #tpu.memory_space<vmem>>, %arg6: memref<64x128xf32, #tpu.memory_space<vmem>>) attributes {dimension_semantics = [#tpu.dimension_semantics<parallel>], iteration_bounds = array<i64: 1>, scalar_prefetch = 0 : i64, scratch_operands = 0 : i64, tpu.core_type = #tpu.core_type<tc>, window_params = [{transform_indices = @transform_0, window_bounds = array<i64: 512, 1>}, {transform_indices = @transform_1, window_bounds = array<i64: 512, 1>}, {pipeline_mode = #tpu.pipeline_mode<synchronous>, transform_indices = @transform_2, window_bounds = array<i64: 2, 128>}, {pipeline_mode = #tpu.pipeline_mode<synchronous>, transform_indices = @transform_3, window_bounds = array<i64: 5, 128, 128>}, {pipeline_mode = #tpu.pipeline_mode<synchronous>, transform_indices = @transform_4, window_bounds = array<i64: 6, 128>}, {transform_indices = @transform_5, window_bounds = array<i64: 64, 128>}]} {
    %c0 = arith.constant 0 : index
    %c0_0 = arith.constant 0 : index
    %0 = vector.load %arg3[%c0, %c0_0] : memref<2x128xf32, #tpu.memory_space<vmem>>, vector<2x128xf32>
    %c0_1 = arith.constant 0 : index
    %c0_2 = arith.constant 0 : index
    %1 = vector.load %arg5[%c0_1, %c0_2] : memref<6x128xf32, #tpu.memory_space<vmem>>, vector<6x128xf32>
    %2 = vector.extract_strided_slice %1 {offsets = [0, 0], sizes = [1, 128], strides = [1, 1]} : vector<6x128xf32> to vector<1x128xf32>
    %c0_3 = arith.constant 0 : index
    %c0_4 = arith.constant 0 : index
    %3 = vector.load %arg1[%c0_3, %c0_4] : memref<512x1xf32, #tpu.memory_space<vmem>>, vector<512x1xf32>
    %4 = vector.extract_strided_slice %0 {offsets = [0, 0], sizes = [1, 128], strides = [1, 1]} : vector<2x128xf32> to vector<1x128xf32>
    %5 = vector.broadcast %3 : vector<512x1xf32> to vector<512x128xf32>
    %6 = vector.broadcast %4 : vector<1x128xf32> to vector<512x128xf32>
    %7 = arith.mulf %5, %6 : vector<512x128xf32>
    %8 = vector.broadcast %2 : vector<1x128xf32> to vector<512x128xf32>
    %9 = arith.addf %8, %7 : vector<512x128xf32>
    %c0_5 = arith.constant 0 : index
    %c0_6 = arith.constant 0 : index
    %10 = vector.load %arg2[%c0_5, %c0_6] : memref<512x1xf32, #tpu.memory_space<vmem>>, vector<512x1xf32>
    %11 = vector.extract_strided_slice %0 {offsets = [1, 0], sizes = [1, 128], strides = [1, 1]} : vector<2x128xf32> to vector<1x128xf32>
    %12 = vector.broadcast %10 : vector<512x1xf32> to vector<512x128xf32>
    %13 = vector.broadcast %11 : vector<1x128xf32> to vector<512x128xf32>
    %14 = arith.mulf %12, %13 : vector<512x128xf32>
    %15 = arith.addf %9, %14 : vector<512x128xf32>
    %cst = arith.constant 0.000000e+00 : f32
    %16 = vector.broadcast %cst : f32 to vector<512x128xf32>
    %17 = arith.maximumf %15, %16 : vector<512x128xf32>
    %18 = arith.truncf %17 : vector<512x128xf32> to vector<512x128xbf16>
    %c0_7 = arith.constant 0 : index
    %c0_8 = arith.constant 0 : index
    %c0_9 = arith.constant 0 : index
    %19 = vector.load %arg4[%c0_7, %c0_8, %c0_9] : memref<5x128x128xbf16, #tpu.memory_space<vmem>>, vector<1x128x128xbf16>
    %20 = vector.shape_cast %19 : vector<1x128x128xbf16> to vector<128x128xbf16>
    %cst_10 = arith.constant dense<0.000000e+00> : vector<512x128xf32>
    %21 = tpu.matmul %18, %20, %cst_10 {dimension_numbers = #tpu.dot_dimension_numbers<[1], [0], [0], [1], [0, 0, 1, 1], [], []>} : vector<512x128xbf16>, vector<128x128xbf16>, vector<512x128xf32> -> vector<512x128xf32>
    %22 = vector.extract_strided_slice %1 {offsets = [1, 0], sizes = [1, 128], strides = [1, 1]} : vector<6x128xf32> to vector<1x128xf32>
    %23 = vector.broadcast %22 : vector<1x128xf32> to vector<512x128xf32>
    %24 = arith.addf %21, %23 : vector<512x128xf32>
    %cst_11 = arith.constant 0.000000e+00 : f32
    %25 = vector.broadcast %cst_11 : f32 to vector<512x128xf32>
    %26 = arith.maximumf %24, %25 : vector<512x128xf32>
    %27 = arith.truncf %26 : vector<512x128xf32> to vector<512x128xbf16>
    %c1 = arith.constant 1 : index
    %c0_12 = arith.constant 0 : index
    %c0_13 = arith.constant 0 : index
    %28 = vector.load %arg4[%c1, %c0_12, %c0_13] : memref<5x128x128xbf16, #tpu.memory_space<vmem>>, vector<1x128x128xbf16>
    %29 = vector.shape_cast %28 : vector<1x128x128xbf16> to vector<128x128xbf16>
    %cst_14 = arith.constant dense<0.000000e+00> : vector<512x128xf32>
    %30 = tpu.matmul %27, %29, %cst_14 {dimension_numbers = #tpu.dot_dimension_numbers<[1], [0], [0], [1], [0, 0, 1, 1], [], []>} : vector<512x128xbf16>, vector<128x128xbf16>, vector<512x128xf32> -> vector<512x128xf32>
    %31 = vector.extract_strided_slice %1 {offsets = [2, 0], sizes = [1, 128], strides = [1, 1]} : vector<6x128xf32> to vector<1x128xf32>
    %32 = vector.broadcast %31 : vector<1x128xf32> to vector<512x128xf32>
    %33 = arith.addf %30, %32 : vector<512x128xf32>
    %cst_15 = arith.constant 0.000000e+00 : f32
    %34 = vector.broadcast %cst_15 : f32 to vector<512x128xf32>
    %35 = arith.maximumf %33, %34 : vector<512x128xf32>
    %36 = tpu.iota {dimensions = array<i32: 1>} : vector<64x512xi32>
    %37 = tpu.iota {dimensions = array<i32: 0>} : vector<64x512xi32>
    %c8_i32 = arith.constant 8 : i32
    %38 = vector.broadcast %c8_i32 : i32 to vector<64x512xi32>
    %39 = arith.muli %37, %38 : vector<64x512xi32>
    %40 = arith.cmpi sge, %36, %39 : vector<64x512xi32>
    %c8_i32_16 = arith.constant 8 : i32
    %41 = vector.broadcast %c8_i32_16 : i32 to vector<64x512xi32>
    %42 = arith.addi %39, %41 : vector<64x512xi32>
    %43 = arith.cmpi slt, %36, %42 : vector<64x512xi32>
    %44 = arith.andi %40, %43 : vector<64x512xi1>
    %cst_17 = arith.constant 1.000000e+00 : f32
    %cst_18 = arith.constant 0.000000e+00 : f32
    %45 = vector.broadcast %cst_17 : f32 to vector<64x512xf32>
    %46 = vector.broadcast %cst_18 : f32 to vector<64x512xf32>
    %47 = arith.select %44, %45, %46 : vector<64x512xi1>, vector<64x512xf32>
    %48 = arith.truncf %47 : vector<64x512xf32> to vector<64x512xbf16>
    %49 = arith.truncf %35 : vector<512x128xf32> to vector<512x128xbf16>
    %cst_19 = arith.constant dense<0.000000e+00> : vector<64x128xf32>
    %50 = tpu.matmul %48, %49, %cst_19 {dimension_numbers = #tpu.dot_dimension_numbers<[1], [0], [0], [1], [0, 0, 1, 1], [], []>} : vector<64x512xbf16>, vector<512x128xbf16>, vector<64x128xf32> -> vector<64x128xf32>
    %51 = arith.truncf %50 : vector<64x128xf32> to vector<64x128xbf16>
    %c2 = arith.constant 2 : index
    %c0_20 = arith.constant 0 : index
    %c0_21 = arith.constant 0 : index
    %52 = vector.load %arg4[%c2, %c0_20, %c0_21] : memref<5x128x128xbf16, #tpu.memory_space<vmem>>, vector<1x128x128xbf16>
    %53 = vector.shape_cast %52 : vector<1x128x128xbf16> to vector<128x128xbf16>
    %cst_22 = arith.constant dense<0.000000e+00> : vector<64x128xf32>
    %54 = tpu.matmul %51, %53, %cst_22 {dimension_numbers = #tpu.dot_dimension_numbers<[1], [0], [0], [1], [0, 0, 1, 1], [], []>} : vector<64x128xbf16>, vector<128x128xbf16>, vector<64x128xf32> -> vector<64x128xf32>
    %55 = vector.extract_strided_slice %1 {offsets = [3, 0], sizes = [1, 128], strides = [1, 1]} : vector<6x128xf32> to vector<1x128xf32>
    %56 = vector.broadcast %55 : vector<1x128xf32> to vector<64x128xf32>
    %57 = arith.addf %54, %56 : vector<64x128xf32>
    %58 = arith.truncf %57 : vector<64x128xf32> to vector<64x128xbf16>
    %c3 = arith.constant 3 : index
    %c0_23 = arith.constant 0 : index
    %c0_24 = arith.constant 0 : index
    %59 = vector.load %arg4[%c3, %c0_23, %c0_24] : memref<5x128x128xbf16, #tpu.memory_space<vmem>>, vector<1x128x128xbf16>
    %60 = vector.shape_cast %59 : vector<1x128x128xbf16> to vector<128x128xbf16>
    %cst_25 = arith.constant dense<0.000000e+00> : vector<64x128xf32>
    %61 = tpu.matmul %58, %60, %cst_25 {dimension_numbers = #tpu.dot_dimension_numbers<[1], [0], [0], [1], [0, 0, 1, 1], [], []>} : vector<64x128xbf16>, vector<128x128xbf16>, vector<64x128xf32> -> vector<64x128xf32>
    %62 = vector.extract_strided_slice %1 {offsets = [4, 0], sizes = [1, 128], strides = [1, 1]} : vector<6x128xf32> to vector<1x128xf32>
    %63 = vector.broadcast %62 : vector<1x128xf32> to vector<64x128xf32>
    %64 = arith.addf %61, %63 : vector<64x128xf32>
    %cst_26 = arith.constant 0.000000e+00 : f32
    %65 = vector.broadcast %cst_26 : f32 to vector<64x128xf32>
    %66 = arith.maximumf %64, %65 : vector<64x128xf32>
    %67 = arith.truncf %66 : vector<64x128xf32> to vector<64x128xbf16>
    %c4 = arith.constant 4 : index
    %c0_27 = arith.constant 0 : index
    %c0_28 = arith.constant 0 : index
    %68 = vector.load %arg4[%c4, %c0_27, %c0_28] : memref<5x128x128xbf16, #tpu.memory_space<vmem>>, vector<1x128x128xbf16>
    %69 = vector.shape_cast %68 : vector<1x128x128xbf16> to vector<128x128xbf16>
    %cst_29 = arith.constant dense<0.000000e+00> : vector<64x128xf32>
    %70 = tpu.matmul %67, %69, %cst_29 {dimension_numbers = #tpu.dot_dimension_numbers<[1], [0], [0], [1], [0, 0, 1, 1], [], []>} : vector<64x128xbf16>, vector<128x128xbf16>, vector<64x128xf32> -> vector<64x128xf32>
    %71 = vector.extract_strided_slice %1 {offsets = [5, 0], sizes = [1, 128], strides = [1, 1]} : vector<6x128xf32> to vector<1x128xf32>
    %72 = vector.broadcast %71 : vector<1x128xf32> to vector<64x128xf32>
    %73 = arith.addf %70, %72 : vector<64x128xf32>
    %c0_30 = arith.constant 0 : index
    %c0_31 = arith.constant 0 : index
    %74 = vector.load %arg6[%c0_30, %c0_31] : memref<64x128xf32, #tpu.memory_space<vmem>>, vector<64x128xf32>
    tpu.vector_store %arg6[%c0_30, %c0_31], %73 {strides = array<i32>} : memref<64x128xf32, #tpu.memory_space<vmem>>, vector<64x128xf32>,
    return
  }
  func.func @transform_0(%arg0: i32) -> (i32, i32) {
    %c0_i32 = arith.constant 0 : i32
    %c0_i32_0 = arith.constant 0 : i32
    return %arg0, %c0_i32 : i32, i32
  }
  func.func @transform_1(%arg0: i32) -> (i32, i32) {
    %c0_i32 = arith.constant 0 : i32
    %c0_i32_0 = arith.constant 0 : i32
    return %arg0, %c0_i32 : i32, i32
  }
  func.func @transform_2(%arg0: i32) -> (i32, i32) {
    %c0_i32 = arith.constant 0 : i32
    %c0_i32_0 = arith.constant 0 : i32
    %c0_i32_1 = arith.constant 0 : i32
    return %c0_i32, %c0_i32_0 : i32, i32
  }
  func.func @transform_3(%arg0: i32) -> (i32, i32, i32) {
    %c0_i32 = arith.constant 0 : i32
    %c0_i32_0 = arith.constant 0 : i32
    %c0_i32_1 = arith.constant 0 : i32
    %c0_i32_2 = arith.constant 0 : i32
    return %c0_i32, %c0_i32_0, %c0_i32_1 : i32, i32, i32
  }
  func.func @transform_4(%arg0: i32) -> (i32, i32) {
    %c0_i32 = arith.constant 0 : i32
    %c0_i32_0 = arith.constant 0 : i32
    %c0_i32_1 = arith.constant 0 : i32
    return %c0_i32, %c0_i32_0 : i32, i32
  }
  func.func @transform_5(%arg0: i32) -> (i32, i32) {
    %c0_i32 = arith.constant 0 : i32
    %c0_i32_0 = arith.constant 0 : i32
    return %arg0, %c0_i32 : i32, i32
  }
}

</mosaic_0001>

<llo_original>
// kernel: tpu_custom_call.1
$region0: #{tpu_custom_call.1}
  #allocation0 [shape = 'u32[]', space=smem, size = 0x4, offset = 0x4, fixed_abs, tag = 'smem constant byte address 0x4 - core index']
  #allocation1 [shape = 'u32[72,128]{1,0:T(1,128)}', space=vmem, size = 0x9000, scoped, tag = 'internal scratch']
  %s0 = inlined_call_operand.vmem [shape: f32[512,1], index: 0, kind: input, shape index: {}]
  %s1 = inlined_call_operand.vmem [shape: f32[512,1], index: 1, kind: input, shape index: {}]
  %s2 = inlined_call_operand.vmem [shape: f32[2,128], index: 2, kind: input, shape index: {}]
  %s3 = inlined_call_operand.vmem [shape: bf16[5,128,128], index: 3, kind: input, shape index: {}]
  %s4 = inlined_call_operand.vmem [shape: f32[6,128], index: 4, kind: input, shape index: {}]
  %s5 = inlined_call_operand.hbm [shape: f32[64,128], index: 5, kind: output, shape index: {}]
  %s6 = sld [smem:[#allocation0]]
  $region30: #{tpu_custom_call.1} parent=0
    _
  %s8 = ssub.s32 1, %s6
  %s9 = scalar_select 0, %s8, %s6
  $region1: #{tpu_custom_call.1} parent=0
    #allocation2 [shape = 'u8[32768]{0}', space=vmem, size = 0x8000, scoped, tag = 'output window, operand 0, single buffered']
    #allocation3 [shape = 's32[1]{0}', space=sflag, size = 0x4, scoped, tag = 'scoped memory for tpu_custom_call.1']
    %10 = vsyncpa [#allocation3], 0
    // Predicated region
    $region2: #{tpu_custom_call.1} parent=1 // pred_check
      _
    $region3: #{tpu_custom_call.1} parent=1 // pred_check_branch
      %12 = sbr.rel (0) target = $region5
    $region4: #{tpu_custom_call.1} parent=1 // pred_region
      _
    $region5: #{tpu_custom_call.1} parent=1 // pred_fallthru
      _
    // Predicated region
    $region6: #{tpu_custom_call.1} parent=1 // pred_check
      _
    $region7: #{tpu_custom_call.1} parent=1 // pred_check_branch
      %14 = sbr.rel (0) target = $region9
    $region8: #{tpu_custom_call.1} parent=1 // pred_region
      _
    $region9: #{tpu_custom_call.1} parent=1 // pred_fallthru
      _
    // Predicated region
    $region10: #{tpu_custom_call.1} parent=1 // pred_check
      _
    $region11: #{tpu_custom_call.1} parent=1 // pred_check_branch
      %16 = sbr.rel (0) target = $region13
    $region12: #{tpu_custom_call.1} parent=1 // pred_region
      _
    $region13: #{tpu_custom_call.1} parent=1 // pred_fallthru
      _
    // Predicated region
    $region14: #{tpu_custom_call.1} parent=1 // pred_check
      _
    $region15: #{tpu_custom_call.1} parent=1 // pred_check_branch
      %18 = sbr.rel (0) target = $region17
    $region16: #{tpu_custom_call.1} parent=1 // pred_region
      _
    $region17: #{tpu_custom_call.1} parent=1 // pred_fallthru
      _
    // Predicated region
    $region18: #{tpu_custom_call.1} parent=1 // pred_check
      _
    $region19: #{tpu_custom_call.1} parent=1 // pred_check_branch
      %20 = sbr.rel (0) target = $region21
    $region20: #{tpu_custom_call.1} parent=1 // pred_region
      _
    $region21: #{tpu_custom_call.1} parent=1 // pred_fallthru
      _
    %v21 = vld [vmem:[%s2] sm:$0x3]
    %v22 = vld [vmem:[%s4] sm:$0x3f]
    %v23 = vld [vmem:[%s0] sm:$0xff]
    %v24 = vld [vmem:[%s0 + $0x8] sm:$0xff]
    %v25 = vld [vmem:[%s0 + $0x10] sm:$0xff]
    %v26 = vld [vmem:[%s0 + $0x18] sm:$0xff]
    %v27 = vld [vmem:[%s0 + $0x20] sm:$0xff]
    %v28 = vld [vmem:[%s0 + $0x28] sm:$0xff]
    %v29 = vld [vmem:[%s0 + $0x30] sm:$0xff]
    %v30 = vld [vmem:[%s0 + $0x38] sm:$0xff]
    %v31 = vld [vmem:[%s0 + $0x40] sm:$0xff]
    %v32 = vld [vmem:[%s0 + $0x48] sm:$0xff]
    %v33 = vld [vmem:[%s0 + $0x50] sm:$0xff]
    %v34 = vld [vmem:[%s0 + $0x58] sm:$0xff]
    %v35 = vld [vmem:[%s0 + $0x60] sm:$0xff]
    %v36 = vld [vmem:[%s0 + $0x68] sm:$0xff]
    %v37 = vld [vmem:[%s0 + $0x70] sm:$0xff]
    %v38 = vld [vmem:[%s0 + $0x78] sm:$0xff]
    %v39 = vld [vmem:[%s0 + $0x80] sm:$0xff]
    %v40 = vld [vmem:[%s0 + $0x88] sm:$0xff]
    %v41 = vld [vmem:[%s0 + $0x90] sm:$0xff]
    %v42 = vld [vmem:[%s0 + $0x98] sm:$0xff]
    %v43 = vld [vmem:[%s0 + $0xa0] sm:$0xff]
    %v44 = vld [vmem:[%s0 + $0xa8] sm:$0xff]
    %v45 = vld [vmem:[%s0 + $0xb0] sm:$0xff]
    %v46 = vld [vmem:[%s0 + $0xb8] sm:$0xff]
    %v47 = vld [vmem:[%s0 + $0xc0] sm:$0xff]
    %v48 = vld [vmem:[%s0 + $0xc8] sm:$0xff]
    %v49 = vld [vmem:[%s0 + $0xd0] sm:$0xff]
    %v50 = vld [vmem:[%s0 + $0xd8] sm:$0xff]
    %v51 = vld [vmem:[%s0 + $0xe0] sm:$0xff]
    %v52 = vld [vmem:[%s0 + $0xe8] sm:$0xff]
    %v53 = vld [vmem:[%s0 + $0xf0] sm:$0xff]
    %v54 = vld [vmem:[%s0 + $0xf8] sm:$0xff]
    %v55 = vld [vmem:[%s0 + $0x100] sm:$0xff]
    %v56 = vld [vmem:[%s0 + $0x108] sm:$0xff]
    %v57 = vld [vmem:[%s0 + $0x110] sm:$0xff]
    %v58 = vld [vmem:[%s0 + $0x118] sm:$0xff]
    %v59 = vld [vmem:[%s0 + $0x120] sm:$0xff]
    %v60 = vld [vmem:[%s0 + $0x128] sm:$0xff]
    %v61 = vld [vmem:[%s0 + $0x130] sm:$0xff]
    %v62 = vld [vmem:[%s0 + $0x138] sm:$0xff]
    %v63 = vld [vmem:[%s0 + $0x140] sm:$0xff]
    %v64 = vld [vmem:[%s0 + $0x148] sm:$0xff]
    %v65 = vld [vmem:[%s0 + $0x150] sm:$0xff]
    %v66 = vld [vmem:[%s0 + $0x158] sm:$0xff]
    %v67 = vld [vmem:[%s0 + $0x160] sm:$0xff]
    %v68 = vld [vmem:[%s0 + $0x168] sm:$0xff]
    %v69 = vld [vmem:[%s0 + $0x170] sm:$0xff]
    %v70 = vld [vmem:[%s0 + $0x178] sm:$0xff]
    %v71 = vld [vmem:[%s0 + $0x180] sm:$0xff]
    %v72 = vld [vmem:[%s0 + $0x188] sm:$0xff]
    %v73 = vld [vmem:[%s0 + $0x190] sm:$0xff]
    %v74 = vld [vmem:[%s0 + $0x198] sm:$0xff]
    %v75 = vld [vmem:[%s0 + $0x1a0] sm:$0xff]
    %v76 = vld [vmem:[%s0 + $0x1a8] sm:$0xff]
    %v77 = vld [vmem:[%s0 + $0x1b0] sm:$0xff]
    %v78 = vld [vmem:[%s0 + $0x1b8] sm:$0xff]
    %v79 = vld [vmem:[%s0 + $0x1c0] sm:$0xff]
    %v80 = vld [vmem:[%s0 + $0x1c8] sm:$0xff]
    %v81 = vld [vmem:[%s0 + $0x1d0] sm:$0xff]
    %v82 = vld [vmem:[%s0 + $0x1d8] sm:$0xff]
    %v83 = vld [vmem:[%s0 + $0x1e0] sm:$0xff]
    %v84 = vld [vmem:[%s0 + $0x1e8] sm:$0xff]
    %v85 = vld [vmem:[%s0 + $0x1f0] sm:$0xff]
    %v86 = vld [vmem:[%s0 + $0x1f8] sm:$0xff]
    %88 = vset.pattern.permute.xlu0 0
    %89 = vperm.xlu0 %88, %v23
    %v90 = vpop.permute.xlu0 %89
    %93 = vset.pattern.permute.xlu0 0
    %94 = vperm.xlu0 %93, %v24
    %v95 = vpop.permute.xlu0 %94
    %98 = vset.pattern.permute.xlu0 0
    %99 = vperm.xlu0 %98, %v25
    %v100 = vpop.permute.xlu0 %99
    %103 = vset.pattern.permute.xlu0 0
    %104 = vperm.xlu0 %103, %v26
    %v105 = vpop.permute.xlu0 %104
    %108 = vset.pattern.permute.xlu0 0
    %109 = vperm.xlu0 %108, %v27
    %v110 = vpop.permute.xlu0 %109
    %113 = vset.pattern.permute.xlu0 0
    %114 = vperm.xlu0 %113, %v28
    %v115 = vpop.permute.xlu0 %114
    %118 = vset.pattern.permute.xlu0 0
    %119 = vperm.xlu0 %118, %v29
    %v120 = vpop.permute.xlu0 %119
    %123 = vset.pattern.permute.xlu0 0
    %124 = vperm.xlu0 %123, %v30
    %v125 = vpop.permute.xlu0 %124
    %128 = vset.pattern.permute.xlu0 0
    %129 = vperm.xlu0 %128, %v31
    %v130 = vpop.permute.xlu0 %129
    %133 = vset.pattern.permute.xlu0 0
    %134 = vperm.xlu0 %133, %v32
    %v135 = vpop.permute.xlu0 %134
    %138 = vset.pattern.permute.xlu0 0
    %139 = vperm.xlu0 %138, %v33
    %v140 = vpop.permute.xlu0 %139
    %143 = vset.pattern.permute.xlu0 0
    %144 = vperm.xlu0 %143, %v34
    %v145 = vpop.permute.xlu0 %144
    %148 = vset.pattern.permute.xlu0 0
    %149 = vperm.xlu0 %148, %v35
    %v150 = vpop.permute.xlu0 %149
    %153 = vset.pattern.permute.xlu0 0
    %154 = vperm.xlu0 %153, %v36
    %v155 = vpop.permute.xlu0 %154
    %158 = vset.pattern.permute.xlu0 0
    %159 = vperm.xlu0 %158, %v37
    %v160 = vpop.permute.xlu0 %159
    %163 = vset.pattern.permute.xlu0 0
    %164 = vperm.xlu0 %163, %v38
    %v165 = vpop.permute.xlu0 %164
    %168 = vset.pattern.permute.xlu0 0
    %169 = vperm.xlu0 %168, %v39
    %v170 = vpop.permute.xlu0 %169
    %173 = vset.pattern.permute.xlu0 0
    %174 = vperm.xlu0 %173, %v40
    %v175 = vpop.permute.xlu0 %174
    %178 = vset.pattern.permute.xlu0 0
    %179 = vperm.xlu0 %178, %v41
    %v180 = vpop.permute.xlu0 %179
    %183 = vset.pattern.permute.xlu0 0
    %184 = vperm.xlu0 %183, %v42
    %v185 = vpop.permute.xlu0 %184
    %188 = vset.pattern.permute.xlu0 0
    %189 = vperm.xlu0 %188, %v43
    %v190 = vpop.permute.xlu0 %189
    %193 = vset.pattern.permute.xlu0 0
    %194 = vperm.xlu0 %193, %v44
    %v195 = vpop.permute.xlu0 %194
    %198 = vset.pattern.permute.xlu0 0
    %199 = vperm.xlu0 %198, %v45
    %v200 = vpop.permute.xlu0 %199
    %203 = vset.pattern.permute.xlu0 0
    %204 = vperm.xlu0 %203, %v46
    %v205 = vpop.permute.xlu0 %204
    %208 = vset.pattern.permute.xlu0 0
    %209 = vperm.xlu0 %208, %v47
    %v210 = vpop.permute.xlu0 %209
    %213 = vset.pattern.permute.xlu0 0
    %214 = vperm.xlu0 %213, %v48
    %v215 = vpop.permute.xlu0 %214
    %218 = vset.pattern.permute.xlu0 0
    %219 = vperm.xlu0 %218, %v49
    %v220 = vpop.permute.xlu0 %219
    %223 = vset.pattern.permute.xlu0 0
    %224 = vperm.xlu0 %223, %v50
    %v225 = vpop.permute.xlu0 %224
    %228 = vset.pattern.permute.xlu0 0
    %229 = vperm.xlu0 %228, %v51
    %v230 = vpop.permute.xlu0 %229
    %233 = vset.pattern.permute.xlu0 0
    %234 = vperm.xlu0 %233, %v52
    %v235 = vpop.permute.xlu0 %234
    %238 = vset.pattern.permute.xlu0 0
    %239 = vperm.xlu0 %238, %v53
    %v240 = vpop.permute.xlu0 %239
    %243 = vset.pattern.permute.xlu0 0
    %244 = vperm.xlu0 %243, %v54
    %v245 = vpop.permute.xlu0 %244
    %248 = vset.pattern.permute.xlu0 0
    %249 = vperm.xlu0 %248, %v55
    %v250 = vpop.permute.xlu0 %249
    %253 = vset.pattern.permute.xlu0 0
    %254 = vperm.xlu0 %253, %v56
    %v255 = vpop.permute.xlu0 %254
    %258 = vset.pattern.permute.xlu0 0
    %259 = vperm.xlu0 %258, %v57
    %v260 = vpop.permute.xlu0 %259
    %263 = vset.pattern.permute.xlu0 0
    %264 = vperm.xlu0 %263, %v58
    %v265 = vpop.permute.xlu0 %264
    %268 = vset.pattern.permute.xlu0 0
    %269 = vperm.xlu0 %268, %v59
    %v270 = vpop.permute.xlu0 %269
    %273 = vset.pattern.permute.xlu0 0
    %274 = vperm.xlu0 %273, %v60
    %v275 = vpop.permute.xlu0 %274
    %278 = vset.pattern.permute.xlu0 0
    %279 = vperm.xlu0 %278, %v61
    %v280 = vpop.permute.xlu0 %279
    %283 = vset.pattern.permute.xlu0 0
    %284 = vperm.xlu0 %283, %v62
    %v285 = vpop.permute.xlu0 %284
    %288 = vset.pattern.permute.xlu0 0
    %289 = vperm.xlu0 %288, %v63
    %v290 = vpop.permute.xlu0 %289
    %293 = vset.pattern.permute.xlu0 0
    %294 = vperm.xlu0 %293, %v64
    %v295 = vpop.permute.xlu0 %294
    %298 = vset.pattern.permute.xlu0 0
    %299 = vperm.xlu0 %298, %v65
    %v300 = vpop.permute.xlu0 %299
    %303 = vset.pattern.permute.xlu0 0
    %304 = vperm.xlu0 %303, %v66
    %v305 = vpop.permute.xlu0 %304
    %308 = vset.pattern.permute.xlu0 0
    %309 = vperm.xlu0 %308, %v67
    %v310 = vpop.permute.xlu0 %309
    %313 = vset.pattern.permute.xlu0 0
    %314 = vperm.xlu0 %313, %v68
    %v315 = vpop.permute.xlu0 %314
    %318 = vset.pattern.permute.xlu0 0
    %319 = vperm.xlu0 %318, %v69
    %v320 = vpop.permute.xlu0 %319
    %323 = vset.pattern.permute.xlu0 0
    %324 = vperm.xlu0 %323, %v70
    %v325 = vpop.permute.xlu0 %324
    %328 = vset.pattern.permute.xlu0 0
    %329 = vperm.xlu0 %328, %v71
    %v330 = vpop.permute.xlu0 %329
    %333 = vset.pattern.permute.xlu0 0
    %334 = vperm.xlu0 %333, %v72
    %v335 = vpop.permute.xlu0 %334
    %338 = vset.pattern.permute.xlu0 0
    %339 = vperm.xlu0 %338, %v73
    %v340 = vpop.permute.xlu0 %339
    %343 = vset.pattern.permute.xlu0 0
    %344 = vperm.xlu0 %343, %v74
    %v345 = vpop.permute.xlu0 %344
    %348 = vset.pattern.permute.xlu0 0
    %349 = vperm.xlu0 %348, %v75
    %v350 = vpop.permute.xlu0 %349
    %353 = vset.pattern.permute.xlu0 0
    %354 = vperm.xlu0 %353, %v76
    %v355 = vpop.permute.xlu0 %354
    %358 = vset.pattern.permute.xlu0 0
    %359 = vperm.xlu0 %358, %v77
    %v360 = vpop.permute.xlu0 %359
    %363 = vset.pattern.permute.xlu0 0
    %364 = vperm.xlu0 %363, %v78
    %v365 = vpop.permute.xlu0 %364
    %368 = vset.pattern.permute.xlu0 0
    %369 = vperm.xlu0 %368, %v79
    %v370 = vpop.permute.xlu0 %369
    %373 = vset.pattern.permute.xlu0 0
    %374 = vperm.xlu0 %373, %v80
    %v375 = vpop.permute.xlu0 %374
    %378 = vset.pattern.permute.xlu0 0
    %379 = vperm.xlu0 %378, %v81
    %v380 = vpop.permute.xlu0 %379
    %383 = vset.pattern.permute.xlu0 0
    %384 = vperm.xlu0 %383, %v82
    %v385 = vpop.permute.xlu0 %384
    %388 = vset.pattern.permute.xlu0 0
    %389 = vperm.xlu0 %388, %v83
    %v390 = vpop.permute.xlu0 %389
    %393 = vset.pattern.permute.xlu0 0
    %394 = vperm.xlu0 %393, %v84
    %v395 = vpop.permute.xlu0 %394
    %398 = vset.pattern.permute.xlu0 0
    %399 = vperm.xlu0 %398, %v85
    %v400 = vpop.permute.xlu0 %399
    %403 = vset.pattern.permute.xlu0 0
    %404 = vperm.xlu0 %403, %v86
    %v405 = vpop.permute.xlu0 %404
    %v407 = vperm.slane %v21, 0
    %v408 = vmul.f32 %v90, %v407
    %v409 = vmul.f32 %v95, %v407
    %v410 = vmul.f32 %v100, %v407
    %v411 = vmul.f32 %v105, %v407
    %v412 = vmul.f32 %v110, %v407
    %v413 = vmul.f32 %v115, %v407
    %v414 = vmul.f32 %v120, %v407
    %v415 = vmul.f32 %v125, %v407
    %v416 = vmul.f32 %v130, %v407
    %v417 = vmul.f32 %v135, %v407
    %v418 = vmul.f32 %v140, %v407
    %v419 = vmul.f32 %v145, %v407
    %v420 = vmul.f32 %v150, %v407
    %v421 = vmul.f32 %v155, %v407
    %v422 = vmul.f32 %v160, %v407
    %v423 = vmul.f32 %v165, %v407
    %v424 = vmul.f32 %v170, %v407
    %v425 = vmul.f32 %v175, %v407
    %v426 = vmul.f32 %v180, %v407
    %v427 = vmul.f32 %v185, %v407
    %v428 = vmul.f32 %v190, %v407
    %v429 = vmul.f32 %v195, %v407
    %v430 = vmul.f32 %v200, %v407
    %v431 = vmul.f32 %v205, %v407
    %v432 = vmul.f32 %v210, %v407
    %v433 = vmul.f32 %v215, %v407
    %v434 = vmul.f32 %v220, %v407
    %v435 = vmul.f32 %v225, %v407
    %v436 = vmul.f32 %v230, %v407
    %v437 = vmul.f32 %v235, %v407
    %v438 = vmul.f32 %v240, %v407
    %v439 = vmul.f32 %v245, %v407
    %v440 = vmul.f32 %v250, %v407
    %v441 = vmul.f32 %v255, %v407
    %v442 = vmul.f32 %v260, %v407
    %v443 = vmul.f32 %v265, %v407
    %v444 = vmul.f32 %v270, %v407
    %v445 = vmul.f32 %v275, %v407
    %v446 = vmul.f32 %v280, %v407
    %v447 = vmul.f32 %v285, %v407
    %v448 = vmul.f32 %v290, %v407
    %v449 = vmul.f32 %v295, %v407
    %v450 = vmul.f32 %v300, %v407
    %v451 = vmul.f32 %v305, %v407
    %v452 = vmul.f32 %v310, %v407
    %v453 = vmul.f32 %v315, %v407
    %v454 = vmul.f32 %v320, %v407
    %v455 = vmul.f32 %v325, %v407
    %v456 = vmul.f32 %v330, %v407
    %v457 = vmul.f32 %v335, %v407
    %v458 = vmul.f32 %v340, %v407
    %v459 = vmul.f32 %v345, %v407
    %v460 = vmul.f32 %v350, %v407
    %v461 = vmul.f32 %v355, %v407
    %v462 = vmul.f32 %v360, %v407
    %v463 = vmul.f32 %v365, %v407
    %v464 = vmul.f32 %v370, %v407
    %v465 = vmul.f32 %v375, %v407
    %v466 = vmul.f32 %v380, %v407
    %v467 = vmul.f32 %v385, %v407
    %v468 = vmul.f32 %v390, %v407
    %v469 = vmul.f32 %v395, %v407
    %v470 = vmul.f32 %v400, %v407
    %v471 = vmul.f32 %v405, %v407
    %v472 = vperm.slane %v22, 0
    %v473 = vadd.f32 %v472, %v408
    %v474 = vadd.f32 %v472, %v409
    %v475 = vadd.f32 %v472, %v410
    %v476 = vadd.f32 %v472, %v411
    %v477 = vadd.f32 %v472, %v412
    %v478 = vadd.f32 %v472, %v413
    %v479 = vadd.f32 %v472, %v414
    %v480 = vadd.f32 %v472, %v415
    %v481 = vadd.f32 %v472, %v416
    %v482 = vadd.f32 %v472, %v417
    %v483 = vadd.f32 %v472, %v418
    %v484 = vadd.f32 %v472, %v419
    %v485 = vadd.f32 %v472, %v420
    %v486 = vadd.f32 %v472, %v421
    %v487 = vadd.f32 %v472, %v422
    %v488 = vadd.f32 %v472, %v423
    %v489 = vadd.f32 %v472, %v424
    %v490 = vadd.f32 %v472, %v425
    %v491 = vadd.f32 %v472, %v426
    %v492 = vadd.f32 %v472, %v427
    %v493 = vadd.f32 %v472, %v428
    %v494 = vadd.f32 %v472, %v429
    %v495 = vadd.f32 %v472, %v430
    %v496 = vadd.f32 %v472, %v431
    %v497 = vadd.f32 %v472, %v432
    %v498 = vadd.f32 %v472, %v433
    %v499 = vadd.f32 %v472, %v434
    %v500 = vadd.f32 %v472, %v435
    %v501 = vadd.f32 %v472, %v436
    %v502 = vadd.f32 %v472, %v437
    %v503 = vadd.f32 %v472, %v438
    %v504 = vadd.f32 %v472, %v439
    %v505 = vadd.f32 %v472, %v440
    %v506 = vadd.f32 %v472, %v441
    %v507 = vadd.f32 %v472, %v442
    %v508 = vadd.f32 %v472, %v443
    %v509 = vadd.f32 %v472, %v444
    %v510 = vadd.f32 %v472, %v445
    %v511 = vadd.f32 %v472, %v446
    %v512 = vadd.f32 %v472, %v447
    %v513 = vadd.f32 %v472, %v448
    %v514 = vadd.f32 %v472, %v449
    %v515 = vadd.f32 %v472, %v450
    %v516 = vadd.f32 %v472, %v451
    %v517 = vadd.f32 %v472, %v452
    %v518 = vadd.f32 %v472, %v453
    %v519 = vadd.f32 %v472, %v454
    %v520 = vadd.f32 %v472, %v455
    %v521 = vadd.f32 %v472, %v456
    %v522 = vadd.f32 %v472, %v457
    %v523 = vadd.f32 %v472, %v458
    %v524 = vadd.f32 %v472, %v459
    %v525 = vadd.f32 %v472, %v460
    %v526 = vadd.f32 %v472, %v461
    %v527 = vadd.f32 %v472, %v462
    %v528 = vadd.f32 %v472, %v463
    %v529 = vadd.f32 %v472, %v464
    %v530 = vadd.f32 %v472, %v465
    %v531 = vadd.f32 %v472, %v466
    %v532 = vadd.f32 %v472, %v467
    %v533 = vadd.f32 %v472, %v468
    %v534 = vadd.f32 %v472, %v469
    %v535 = vadd.f32 %v472, %v470
    %v536 = vadd.f32 %v472, %v471
    %v537 = vld [vmem:[%s1] sm:$0xff]
    %v538 = vld [vmem:[%s1 + $0x8] sm:$0xff]
    %v539 = vld [vmem:[%s1 + $0x10] sm:$0xff]
    %v540 = vld [vmem:[%s1 + $0x18] sm:$0xff]
    %v541 = vld [vmem:[%s1 + $0x20] sm:$0xff]
    %v542 = vld [vmem:[%s1 + $0x28] sm:$0xff]
    %v543 = vld [vmem:[%s1 + $0x30] sm:$0xff]
    %v544 = vld [vmem:[%s1 + $0x38] sm:$0xff]
    %v545 = vld [vmem:[%s1 + $0x40] sm:$0xff]
    %v546 = vld [vmem:[%s1 + $0x48] sm:$0xff]
    %v547 = vld [vmem:[%s1 + $0x50] sm:$0xff]
    %v548 = vld [vmem:[%s1 + $0x58] sm:$0xff]
    %v549 = vld [vmem:[%s1 + $0x60] sm:$0xff]
    %v550 = vld [vmem:[%s1 + $0x68] sm:$0xff]
    %v551 = vld [vmem:[%s1 + $0x70] sm:$0xff]
    %v552 = vld [vmem:[%s1 + $0x78] sm:$0xff]
    %v553 = vld [vmem:[%s1 + $0x80] sm:$0xff]
    %v554 = vld [vmem:[%s1 + $0x88] sm:$0xff]
    %v555 = vld [vmem:[%s1 + $0x90] sm:$0xff]
    %v556 = vld [vmem:[%s1 + $0x98] sm:$0xff]
    %v557 = vld [vmem:[%s1 + $0xa0] sm:$0xff]
    %v558 = vld [vmem:[%s1 + $0xa8] sm:$0xff]
    %v559 = vld [vmem:[%s1 + $0xb0] sm:$0xff]
    %v560 = vld [vmem:[%s1 + $0xb8] sm:$0xff]
    %v561 = vld [vmem:[%s1 + $0xc0] sm:$0xff]
    %v562 = vld [vmem:[%s1 + $0xc8] sm:$0xff]
    %v563 = vld [vmem:[%s1 + $0xd0] sm:$0xff]
    %v564 = vld [vmem:[%s1 + $0xd8] sm:$0xff]
    %v565 = vld [vmem:[%s1 + $0xe0] sm:$0xff]
    %v566 = vld [vmem:[%s1 + $0xe8] sm:$0xff]
    %v567 = vld [vmem:[%s1 + $0xf0] sm:$0xff]
    %v568 = vld [vmem:[%s1 + $0xf8] sm:$0xff]
    %v569 = vld [vmem:[%s1 + $0x100] sm:$0xff]
    %v570 = vld [vmem:[%s1 + $0x108] sm:$0xff]
    %v571 = vld [vmem:[%s1 + $0x110] sm:$0xff]
    %v572 = vld [vmem:[%s1 + $0x118] sm:$0xff]
    %v573 = vld [vmem:[%s1 + $0x120] sm:$0xff]
    %v574 = vld [vmem:[%s1 + $0x128] sm:$0xff]
    %v575 = vld [vmem:[%s1 + $0x130] sm:$0xff]
    %v576 = vld [vmem:[%s1 + $0x138] sm:$0xff]
    %v577 = vld [vmem:[%s1 + $0x140] sm:$0xff]
    %v578 = vld [vmem:[%s1 + $0x148] sm:$0xff]
    %v579 = vld [vmem:[%s1 + $0x150] sm:$0xff]
    %v580 = vld [vmem:[%s1 + $0x158] sm:$0xff]
    %v581 = vld [vmem:[%s1 + $0x160] sm:$0xff]
    %v582 = vld [vmem:[%s1 + $0x168] sm:$0xff]
    %v583 = vld [vmem:[%s1 + $0x170] sm:$0xff]
    %v584 = vld [vmem:[%s1 + $0x178] sm:$0xff]
    %v585 = vld [vmem:[%s1 + $0x180] sm:$0xff]
    %v586 = vld [vmem:[%s1 + $0x188] sm:$0xff]
    %v587 = vld [vmem:[%s1 + $0x190] sm:$0xff]
    %v588 = vld [vmem:[%s1 + $0x198] sm:$0xff]
    %v589 = vld [vmem:[%s1 + $0x1a0] sm:$0xff]
    %v590 = vld [vmem:[%s1 + $0x1a8] sm:$0xff]
    %v591 = vld [vmem:[%s1 + $0x1b0] sm:$0xff]
    %v592 = vld [vmem:[%s1 + $0x1b8] sm:$0xff]
    %v593 = vld [vmem:[%s1 + $0x1c0] sm:$0xff]
    %v594 = vld [vmem:[%s1 + $0x1c8] sm:$0xff]
    %v595 = vld [vmem:[%s1 + $0x1d0] sm:$0xff]
    %v596 = vld [vmem:[%s1 + $0x1d8] sm:$0xff]
    %v597 = vld [vmem:[%s1 + $0x1e0] sm:$0xff]
    %v598 = vld [vmem:[%s1 + $0x1e8] sm:$0xff]
    %v599 = vld [vmem:[%s1 + $0x1f0] sm:$0xff]
    %v600 = vld [vmem:[%s1 + $0x1f8] sm:$0xff]
    %602 = vset.pattern.permute.xlu0 0
    %603 = vperm.xlu0 %602, %v537
    %v604 = vpop.permute.xlu0 %603
    %607 = vset.pattern.permute.xlu0 0
    %608 = vperm.xlu0 %607, %v538
    %v609 = vpop.permute.xlu0 %608
    %612 = vset.pattern.permute.xlu0 0
    %613 = vperm.xlu0 %612, %v539
    %v614 = vpop.permute.xlu0 %613
    %617 = vset.pattern.permute.xlu0 0
    %618 = vperm.xlu0 %617, %v540
    %v619 = vpop.permute.xlu0 %618
    %622 = vset.pattern.permute.xlu0 0
    %623 = vperm.xlu0 %622, %v541
    %v624 = vpop.permute.xlu0 %623
    %627 = vset.pattern.permute.xlu0 0
    %628 = vperm.xlu0 %627, %v542
    %v629 = vpop.permute.xlu0 %628
    %632 = vset.pattern.permute.xlu0 0
    %633 = vperm.xlu0 %632, %v543
    %v634 = vpop.permute.xlu0 %633
    %637 = vset.pattern.permute.xlu0 0
    %638 = vperm.xlu0 %637, %v544
    %v639 = vpop.permute.xlu0 %638
    %642 = vset.pattern.permute.xlu0 0
    %643 = vperm.xlu0 %642, %v545
    %v644 = vpop.permute.xlu0 %643
    %647 = vset.pattern.permute.xlu0 0
    %648 = vperm.xlu0 %647, %v546
    %v649 = vpop.permute.xlu0 %648
    %652 = vset.pattern.permute.xlu0 0
    %653 = vperm.xlu0 %652, %v547
    %v654 = vpop.permute.xlu0 %653
    %657 = vset.pattern.permute.xlu0 0
    %658 = vperm.xlu0 %657, %v548
    %v659 = vpop.permute.xlu0 %658
    %662 = vset.pattern.permute.xlu0 0
    %663 = vperm.xlu0 %662, %v549
    %v664 = vpop.permute.xlu0 %663
    %667 = vset.pattern.permute.xlu0 0
    %668 = vperm.xlu0 %667, %v550
    %v669 = vpop.permute.xlu0 %668
    %672 = vset.pattern.permute.xlu0 0
    %673 = vperm.xlu0 %672, %v551
    %v674 = vpop.permute.xlu0 %673
    %677 = vset.pattern.permute.xlu0 0
    %678 = vperm.xlu0 %677, %v552
    %v679 = vpop.permute.xlu0 %678
    %682 = vset.pattern.permute.xlu0 0
    %683 = vperm.xlu0 %682, %v553
    %v684 = vpop.permute.xlu0 %683
    %687 = vset.pattern.permute.xlu0 0
    %688 = vperm.xlu0 %687, %v554
    %v689 = vpop.permute.xlu0 %688
    %692 = vset.pattern.permute.xlu0 0
    %693 = vperm.xlu0 %692, %v555
    %v694 = vpop.permute.xlu0 %693
    %697 = vset.pattern.permute.xlu0 0
    %698 = vperm.xlu0 %697, %v556
    %v699 = vpop.permute.xlu0 %698
    %702 = vset.pattern.permute.xlu0 0
    %703 = vperm.xlu0 %702, %v557
    %v704 = vpop.permute.xlu0 %703
    %707 = vset.pattern.permute.xlu0 0
    %708 = vperm.xlu0 %707, %v558
    %v709 = vpop.permute.xlu0 %708
    %712 = vset.pattern.permute.xlu0 0
    %713 = vperm.xlu0 %712, %v559
    %v714 = vpop.permute.xlu0 %713
    %717 = vset.pattern.permute.xlu0 0
    %718 = vperm.xlu0 %717, %v560
    %v719 = vpop.permute.xlu0 %718
    %722 = vset.pattern.permute.xlu0 0
    %723 = vperm.xlu0 %722, %v561
    %v724 = vpop.permute.xlu0 %723
    %727 = vset.pattern.permute.xlu0 0
    %728 = vperm.xlu0 %727, %v562
    %v729 = vpop.permute.xlu0 %728
    %732 = vset.pattern.permute.xlu0 0
    %733 = vperm.xlu0 %732, %v563
    %v734 = vpop.permute.xlu0 %733
    %737 = vset.pattern.permute.xlu0 0
    %738 = vperm.xlu0 %737, %v564
    %v739 = vpop.permute.xlu0 %738
    %742 = vset.pattern.permute.xlu0 0
    %743 = vperm.xlu0 %742, %v565
    %v744 = vpop.permute.xlu0 %743
    %747 = vset.pattern.permute.xlu0 0
    %748 = vperm.xlu0 %747, %v566
    %v749 = vpop.permute.xlu0 %748
    %752 = vset.pattern.permute.xlu0 0
    %753 = vperm.xlu0 %752, %v567
    %v754 = vpop.permute.xlu0 %753
    %757 = vset.pattern.permute.xlu0 0
    %758 = vperm.xlu0 %757, %v568
    %v759 = vpop.permute.xlu0 %758
    %762 = vset.pattern.permute.xlu0 0
    %763 = vperm.xlu0 %762, %v569
    %v764 = vpop.permute.xlu0 %763
    %767 = vset.pattern.permute.xlu0 0
    %768 = vperm.xlu0 %767, %v570
    %v769 = vpop.permute.xlu0 %768
    %772 = vset.pattern.permute.xlu0 0
    %773 = vperm.xlu0 %772, %v571
    %v774 = vpop.permute.xlu0 %773
    %777 = vset.pattern.permute.xlu0 0
    %778 = vperm.xlu0 %777, %v572
    %v779 = vpop.permute.xlu0 %778
    %782 = vset.pattern.permute.xlu0 0
    %783 = vperm.xlu0 %782, %v573
    %v784 = vpop.permute.xlu0 %783
    %787 = vset.pattern.permute.xlu0 0
    %788 = vperm.xlu0 %787, %v574
    %v789 = vpop.permute.xlu0 %788
    %792 = vset.pattern.permute.xlu0 0
    %793 = vperm.xlu0 %792, %v575
    %v794 = vpop.permute.xlu0 %793
    %797 = vset.pattern.permute.xlu0 0
    %798 = vperm.xlu0 %797, %v576
    %v799 = vpop.permute.xlu0 %798
    %802 = vset.pattern.permute.xlu0 0
    %803 = vperm.xlu0 %802, %v577
    %v804 = vpop.permute.xlu0 %803
    %807 = vset.pattern.permute.xlu0 0
    %808 = vperm.xlu0 %807, %v578
    %v809 = vpop.permute.xlu0 %808
    %812 = vset.pattern.permute.xlu0 0
    %813 = vperm.xlu0 %812, %v579
    %v814 = vpop.permute.xlu0 %813
    %817 = vset.pattern.permute.xlu0 0
    %818 = vperm.xlu0 %817, %v580
    %v819 = vpop.permute.xlu0 %818
    %822 = vset.pattern.permute.xlu0 0
    %823 = vperm.xlu0 %822, %v581
    %v824 = vpop.permute.xlu0 %823
    %827 = vset.pattern.permute.xlu0 0
    %828 = vperm.xlu0 %827, %v582
    %v829 = vpop.permute.xlu0 %828
    %832 = vset.pattern.permute.xlu0 0
    %833 = vperm.xlu0 %832, %v583
    %v834 = vpop.permute.xlu0 %833
    %837 = vset.pattern.permute.xlu0 0
    %838 = vperm.xlu0 %837, %v584
    %v839 = vpop.permute.xlu0 %838
    %842 = vset.pattern.permute.xlu0 0
    %843 = vperm.xlu0 %842, %v585
    %v844 = vpop.permute.xlu0 %843
    %847 = vset.pattern.permute.xlu0 0
    %848 = vperm.xlu0 %847, %v586
    %v849 = vpop.permute.xlu0 %848
    %852 = vset.pattern.permute.xlu0 0
    %853 = vperm.xlu0 %852, %v587
    %v854 = vpop.permute.xlu0 %853
    %857 = vset.pattern.permute.xlu0 0
    %858 = vperm.xlu0 %857, %v588
    %v859 = vpop.permute.xlu0 %858
    %862 = vset.pattern.permute.xlu0 0
    %863 = vperm.xlu0 %862, %v589
    %v864 = vpop.permute.xlu0 %863
    %867 = vset.pattern.permute.xlu0 0
    %868 = vperm.xlu0 %867, %v590
    %v869 = vpop.permute.xlu0 %868
    %872 = vset.pattern.permute.xlu0 0
    %873 = vperm.xlu0 %872, %v591
    %v874 = vpop.permute.xlu0 %873
    %877 = vset.pattern.permute.xlu0 0
    %878 = vperm.xlu0 %877, %v592
    %v879 = vpop.permute.xlu0 %878
    %882 = vset.pattern.permute.xlu0 0
    %883 = vperm.xlu0 %882, %v593
    %v884 = vpop.permute.xlu0 %883
    %887 = vset.pattern.permute.xlu0 0
    %888 = vperm.xlu0 %887, %v594
    %v889 = vpop.permute.xlu0 %888
    %892 = vset.pattern.permute.xlu0 0
    %893 = vperm.xlu0 %892, %v595
    %v894 = vpop.permute.xlu0 %893
    %897 = vset.pattern.permute.xlu0 0
    %898 = vperm.xlu0 %897, %v596
    %v899 = vpop.permute.xlu0 %898
    %902 = vset.pattern.permute.xlu0 0
    %903 = vperm.xlu0 %902, %v597
    %v904 = vpop.permute.xlu0 %903
    %907 = vset.pattern.permute.xlu0 0
    %908 = vperm.xlu0 %907, %v598
    %v909 = vpop.permute.xlu0 %908
    %912 = vset.pattern.permute.xlu0 0
    %913 = vperm.xlu0 %912, %v599
    %v914 = vpop.permute.xlu0 %913
    %917 = vset.pattern.permute.xlu0 0
    %918 = vperm.xlu0 %917, %v600
    %v919 = vpop.permute.xlu0 %918
    %v921 = vperm.slane %v21, 1
    %v922 = vmul.f32 %v604, %v921
    %v923 = vmul.f32 %v609, %v921
    %v924 = vmul.f32 %v614, %v921
    %v925 = vmul.f32 %v619, %v921
    %v926 = vmul.f32 %v624, %v921
    %v927 = vmul.f32 %v629, %v921
    %v928 = vmul.f32 %v634, %v921
    %v929 = vmul.f32 %v639, %v921
    %v930 = vmul.f32 %v644, %v921
    %v931 = vmul.f32 %v649, %v921
    %v932 = vmul.f32 %v654, %v921
    %v933 = vmul.f32 %v659, %v921
    %v934 = vmul.f32 %v664, %v921
    %v935 = vmul.f32 %v669, %v921
    %v936 = vmul.f32 %v674, %v921
    %v937 = vmul.f32 %v679, %v921
    %v938 = vmul.f32 %v684, %v921
    %v939 = vmul.f32 %v689, %v921
    %v940 = vmul.f32 %v694, %v921
    %v941 = vmul.f32 %v699, %v921
    %v942 = vmul.f32 %v704, %v921
    %v943 = vmul.f32 %v709, %v921
    %v944 = vmul.f32 %v714, %v921
    %v945 = vmul.f32 %v719, %v921
    %v946 = vmul.f32 %v724, %v921
    %v947 = vmul.f32 %v729, %v921
    %v948 = vmul.f32 %v734, %v921
    %v949 = vmul.f32 %v739, %v921
    %v950 = vmul.f32 %v744, %v921
    %v951 = vmul.f32 %v749, %v921
    %v952 = vmul.f32 %v754, %v921
    %v953 = vmul.f32 %v759, %v921
    %v954 = vmul.f32 %v764, %v921
    %v955 = vmul.f32 %v769, %v921
    %v956 = vmul.f32 %v774, %v921
    %v957 = vmul.f32 %v779, %v921
    %v958 = vmul.f32 %v784, %v921
    %v959 = vmul.f32 %v789, %v921
    %v960 = vmul.f32 %v794, %v921
    %v961 = vmul.f32 %v799, %v921
    %v962 = vmul.f32 %v804, %v921
    %v963 = vmul.f32 %v809, %v921
    %v964 = vmul.f32 %v814, %v921
    %v965 = vmul.f32 %v819, %v921
    %v966 = vmul.f32 %v824, %v921
    %v967 = vmul.f32 %v829, %v921
    %v968 = vmul.f32 %v834, %v921
    %v969 = vmul.f32 %v839, %v921
    %v970 = vmul.f32 %v844, %v921
    %v971 = vmul.f32 %v849, %v921
    %v972 = vmul.f32 %v854, %v921
    %v973 = vmul.f32 %v859, %v921
    %v974 = vmul.f32 %v864, %v921
    %v975 = vmul.f32 %v869, %v921
    %v976 = vmul.f32 %v874, %v921
    %v977 = vmul.f32 %v879, %v921
    %v978 = vmul.f32 %v884, %v921
    %v979 = vmul.f32 %v889, %v921
    %v980 = vmul.f32 %v894, %v921
    %v981 = vmul.f32 %v899, %v921
    %v982 = vmul.f32 %v904, %v921
    %v983 = vmul.f32 %v909, %v921
    %v984 = vmul.f32 %v914, %v921
    %v985 = vmul.f32 %v919, %v921
    %v986 = vadd.f32 %v473, %v922
    %v987 = vadd.f32 %v474, %v923
    %v988 = vadd.f32 %v475, %v924
    %v989 = vadd.f32 %v476, %v925
    %v990 = vadd.f32 %v477, %v926
    %v991 = vadd.f32 %v478, %v927
    %v992 = vadd.f32 %v479, %v928
    %v993 = vadd.f32 %v480, %v929
    %v994 = vadd.f32 %v481, %v930
    %v995 = vadd.f32 %v482, %v931
    %v996 = vadd.f32 %v483, %v932
    %v997 = vadd.f32 %v484, %v933
    %v998 = vadd.f32 %v485, %v934
    %v999 = vadd.f32 %v486, %v935
    %v1000 = vadd.f32 %v487, %v936
    %v1001 = vadd.f32 %v488, %v937
    %v1002 = vadd.f32 %v489, %v938
    %v1003 = vadd.f32 %v490, %v939
    %v1004 = vadd.f32 %v491, %v940
    %v1005 = vadd.f32 %v492, %v941
    %v1006 = vadd.f32 %v493, %v942
    %v1007 = vadd.f32 %v494, %v943
    %v1008 = vadd.f32 %v495, %v944
    %v1009 = vadd.f32 %v496, %v945
    %v1010 = vadd.f32 %v497, %v946
    %v1011 = vadd.f32 %v498, %v947
    %v1012 = vadd.f32 %v499, %v948
    %v1013 = vadd.f32 %v500, %v949
    %v1014 = vadd.f32 %v501, %v950
    %v1015 = vadd.f32 %v502, %v951
    %v1016 = vadd.f32 %v503, %v952
    %v1017 = vadd.f32 %v504, %v953
    %v1018 = vadd.f32 %v505, %v954
    %v1019 = vadd.f32 %v506, %v955
    %v1020 = vadd.f32 %v507, %v956
    %v1021 = vadd.f32 %v508, %v957
    %v1022 = vadd.f32 %v509, %v958
    %v1023 = vadd.f32 %v510, %v959
    %v1024 = vadd.f32 %v511, %v960
    %v1025 = vadd.f32 %v512, %v961
    %v1026 = vadd.f32 %v513, %v962
    %v1027 = vadd.f32 %v514, %v963
    %v1028 = vadd.f32 %v515, %v964
    %v1029 = vadd.f32 %v516, %v965
    %v1030 = vadd.f32 %v517, %v966
    %v1031 = vadd.f32 %v518, %v967
    %v1032 = vadd.f32 %v519, %v968
    %v1033 = vadd.f32 %v520, %v969
    %v1034 = vadd.f32 %v521, %v970
    %v1035 = vadd.f32 %v522, %v971
    %v1036 = vadd.f32 %v523, %v972
    %v1037 = vadd.f32 %v524, %v973
    %v1038 = vadd.f32 %v525, %v974
    %v1039 = vadd.f32 %v526, %v975
    %v1040 = vadd.f32 %v527, %v976
    %v1041 = vadd.f32 %v528, %v977
    %v1042 = vadd.f32 %v529, %v978
    %v1043 = vadd.f32 %v530, %v979
    %v1044 = vadd.f32 %v531, %v980
    %v1045 = vadd.f32 %v532, %v981
    %v1046 = vadd.f32 %v533, %v982
    %v1047 = vadd.f32 %v534, %v983
    %v1048 = vadd.f32 %v535, %v984
    %v1049 = vadd.f32 %v536, %v985
    %v1050 = vmax.f32 %v986, 0.0
    %v1051 = vmax.f32 %v987, 0.0
    %v1052 = vmax.f32 %v988, 0.0
    %v1053 = vmax.f32 %v989, 0.0
    %v1054 = vmax.f32 %v990, 0.0
    %v1055 = vmax.f32 %v991, 0.0
    %v1056 = vmax.f32 %v992, 0.0
    %v1057 = vmax.f32 %v993, 0.0
    %v1058 = vmax.f32 %v994, 0.0
    %v1059 = vmax.f32 %v995, 0.0
    %v1060 = vmax.f32 %v996, 0.0
    %v1061 = vmax.f32 %v997, 0.0
    %v1062 = vmax.f32 %v998, 0.0
    %v1063 = vmax.f32 %v999, 0.0
    %v1064 = vmax.f32 %v1000, 0.0
    %v1065 = vmax.f32 %v1001, 0.0
    %v1066 = vmax.f32 %v1002, 0.0
    %v1067 = vmax.f32 %v1003, 0.0
    %v1068 = vmax.f32 %v1004, 0.0
    %v1069 = vmax.f32 %v1005, 0.0
    %v1070 = vmax.f32 %v1006, 0.0
    %v1071 = vmax.f32 %v1007, 0.0
    %v1072 = vmax.f32 %v1008, 0.0
    %v1073 = vmax.f32 %v1009, 0.0
    %v1074 = vmax.f32 %v1010, 0.0
    %v1075 = vmax.f32 %v1011, 0.0
    %v1076 = vmax.f32 %v1012, 0.0
    %v1077 = vmax.f32 %v1013, 0.0
    %v1078 = vmax.f32 %v1014, 0.0
    %v1079 = vmax.f32 %v1015, 0.0
    %v1080 = vmax.f32 %v1016, 0.0
    %v1081 = vmax.f32 %v1017, 0.0
    %v1082 = vmax.f32 %v1018, 0.0
    %v1083 = vmax.f32 %v1019, 0.0
    %v1084 = vmax.f32 %v1020, 0.0
    %v1085 = vmax.f32 %v1021, 0.0
    %v1086 = vmax.f32 %v1022, 0.0
    %v1087 = vmax.f32 %v1023, 0.0
    %v1088 = vmax.f32 %v1024, 0.0
    %v1089 = vmax.f32 %v1025, 0.0
    %v1090 = vmax.f32 %v1026, 0.0
    %v1091 = vmax.f32 %v1027, 0.0
    %v1092 = vmax.f32 %v1028, 0.0
    %v1093 = vmax.f32 %v1029, 0.0
    %v1094 = vmax.f32 %v1030, 0.0
    %v1095 = vmax.f32 %v1031, 0.0
    %v1096 = vmax.f32 %v1032, 0.0
    %v1097 = vmax.f32 %v1033, 0.0
    %v1098 = vmax.f32 %v1034, 0.0
    %v1099 = vmax.f32 %v1035, 0.0
    %v1100 = vmax.f32 %v1036, 0.0
    %v1101 = vmax.f32 %v1037, 0.0
    %v1102 = vmax.f32 %v1038, 0.0
    %v1103 = vmax.f32 %v1039, 0.0
    %v1104 = vmax.f32 %v1040, 0.0
    %v1105 = vmax.f32 %v1041, 0.0
    %v1106 = vmax.f32 %v1042, 0.0
    %v1107 = vmax.f32 %v1043, 0.0
    %v1108 = vmax.f32 %v1044, 0.0
    %v1109 = vmax.f32 %v1045, 0.0
    %v1110 = vmax.f32 %v1046, 0.0
    %v1111 = vmax.f32 %v1047, 0.0
    %v1112 = vmax.f32 %v1048, 0.0
    %v1113 = vmax.f32 %v1049, 0.0
    %v1114 = vpack.c.bf16 %v1051, %v1050
    %v1115 = vpack.c.bf16 %v1053, %v1052
    %v1116 = vpack.c.bf16 %v1055, %v1054
    %v1117 = vpack.c.bf16 %v1057, %v1056
    %v1118 = vpack.c.bf16 %v1059, %v1058
    %v1119 = vpack.c.bf16 %v1061, %v1060
    %v1120 = vpack.c.bf16 %v1063, %v1062
    %v1121 = vpack.c.bf16 %v1065, %v1064
    %v1122 = vpack.c.bf16 %v1067, %v1066
    %v1123 = vpack.c.bf16 %v1069, %v1068
    %v1124 = vpack.c.bf16 %v1071, %v1070
    %v1125 = vpack.c.bf16 %v1073, %v1072
    %v1126 = vpack.c.bf16 %v1075, %v1074
    %v1127 = vpack.c.bf16 %v1077, %v1076
    %v1128 = vpack.c.bf16 %v1079, %v1078
    %v1129 = vpack.c.bf16 %v1081, %v1080
    %v1130 = vpack.c.bf16 %v1083, %v1082
    %v1131 = vpack.c.bf16 %v1085, %v1084
    %v1132 = vpack.c.bf16 %v1087, %v1086
    %v1133 = vpack.c.bf16 %v1089, %v1088
    %v1134 = vpack.c.bf16 %v1091, %v1090
    %v1135 = vpack.c.bf16 %v1093, %v1092
    %v1136 = vpack.c.bf16 %v1095, %v1094
    %v1137 = vpack.c.bf16 %v1097, %v1096
    %v1138 = vpack.c.bf16 %v1099, %v1098
    %v1139 = vpack.c.bf16 %v1101, %v1100
    %v1140 = vpack.c.bf16 %v1103, %v1102
    %v1141 = vpack.c.bf16 %v1105, %v1104
    %v1142 = vpack.c.bf16 %v1107, %v1106
    %v1143 = vpack.c.bf16 %v1109, %v1108
    %v1144 = vpack.c.bf16 %v1111, %v1110
    %v1145 = vpack.c.bf16 %v1113, %v1112
    %v1146 = vld [vmem:[%s3] sm:$0xf]
    %v1147 = vld [vmem:[%s3 + $0x4] sm:$0xf]
    %v1148 = vld [vmem:[%s3 + $0x8] sm:$0xf]
    %v1149 = vld [vmem:[%s3 + $0xc] sm:$0xf]
    %v1150 = vld [vmem:[%s3 + $0x10] sm:$0xf]
    %v1151 = vld [vmem:[%s3 + $0x14] sm:$0xf]
    %v1152 = vld [vmem:[%s3 + $0x18] sm:$0xf]
    %v1153 = vld [vmem:[%s3 + $0x1c] sm:$0xf]
    %v1154 = vld [vmem:[%s3 + $0x20] sm:$0xf]
    %v1155 = vld [vmem:[%s3 + $0x24] sm:$0xf]
    %v1156 = vld [vmem:[%s3 + $0x28] sm:$0xf]
    %v1157 = vld [vmem:[%s3 + $0x2c] sm:$0xf]
    %v1158 = vld [vmem:[%s3 + $0x30] sm:$0xf]
    %v1159 = vld [vmem:[%s3 + $0x34] sm:$0xf]
    %v1160 = vld [vmem:[%s3 + $0x38] sm:$0xf]
    %v1161 = vld [vmem:[%s3 + $0x3c] sm:$0xf]
    %v1162 = vperm.slane %v22, 1
    %v1179 = vunpack.c.l.b16 %v1146
    %v1180 = vunpack.c.l.b16 %v1147
    %v1181 = vunpack.c.l.b16 %v1148
    %v1182 = vunpack.c.l.b16 %v1149
    %v1183 = vunpack.c.l.b16 %v1150
    %v1184 = vunpack.c.l.b16 %v1151
    %v1185 = vunpack.c.l.b16 %v1152
    %v1186 = vunpack.c.l.b16 %v1153
    %v1187 = vunpack.c.l.b16 %v1154
    %v1188 = vunpack.c.l.b16 %v1155
    %v1189 = vunpack.c.l.b16 %v1156
    %v1190 = vunpack.c.l.b16 %v1157
    %v1191 = vunpack.c.l.b16 %v1158
    %v1192 = vunpack.c.l.b16 %v1159
    %v1193 = vunpack.c.l.b16 %v1160
    %v1194 = vunpack.c.l.b16 %v1161
    %v1195 = vpack.c.b16 %v1180, %v1179
    %v1196 = vpack.c.b16 %v1182, %v1181
    %v1197 = vpack.c.b16 %v1184, %v1183
    %v1198 = vpack.c.b16 %v1186, %v1185
    %v1199 = vpack.c.b16 %v1188, %v1187
    %v1200 = vpack.c.b16 %v1190, %v1189
    %v1201 = vpack.c.b16 %v1192, %v1191
    %v1202 = vpack.c.b16 %v1194, %v1193
    %1211 = vmatpush.bf16.msra.mxu0 %v1202
    %1212 = vmatpush.bf16.msra.mxu0 %v1201
    %1213 = vmatpush.bf16.msra.mxu0 %v1200
    %1214 = vmatpush.bf16.msra.mxu0 %v1199
    %1215 = vmatpush.bf16.msra.mxu0 %v1198
    %1216 = vmatpush.bf16.msra.mxu0 %v1197
    %1217 = vmatpush.bf16.msra.mxu0 %v1196
    %1218 = vmatpush.bf16.msra.mxu0 %v1195
    %1219 = vmatmul.bf16.gmra.mxu0 %v1114
    %v1220 = vpop.f32.mrf.mxu0
    %v1221 = vadd.f32 %v1162, %v1220
    %v1222 = vpop.f32.mrf.mxu0
    %v1223 = vadd.f32 %v1162, %v1222
    %1224 = vmatmul.bf16.gmra.mxu0 %v1115
    %v1225 = vpop.f32.mrf.mxu0
    %v1226 = vadd.f32 %v1162, %v1225
    %v1227 = vpop.f32.mrf.mxu0
    %v1228 = vadd.f32 %v1162, %v1227
    %1229 = vmatmul.bf16.gmra.mxu0 %v1116
    %v1230 = vpop.f32.mrf.mxu0
    %v1231 = vadd.f32 %v1162, %v1230
    %v1232 = vpop.f32.mrf.mxu0
    %v1233 = vadd.f32 %v1162, %v1232
    %1234 = vmatmul.bf16.gmra.mxu0 %v1117
    %v1235 = vpop.f32.mrf.mxu0
    %v1236 = vadd.f32 %v1162, %v1235
    %v1237 = vpop.f32.mrf.mxu0
    %v1238 = vadd.f32 %v1162, %v1237
    %1239 = vmatmul.bf16.gmra.mxu0 %v1118
    %v1240 = vpop.f32.mrf.mxu0
    %v1241 = vadd.f32 %v1162, %v1240
    %v1242 = vpop.f32.mrf.mxu0
    %v1243 = vadd.f32 %v1162, %v1242
    %1244 = vmatmul.bf16.gmra.mxu0 %v1119
    %v1245 = vpop.f32.mrf.mxu0
    %v1246 = vadd.f32 %v1162, %v1245
    %v1247 = vpop.f32.mrf.mxu0
    %v1248 = vadd.f32 %v1162, %v1247
    %1249 = vmatmul.bf16.gmra.mxu0 %v1120
    %v1250 = vpop.f32.mrf.mxu0
    %v1251 = vadd.f32 %v1162, %v1250
    %v1252 = vpop.f32.mrf.mxu0
    %v1253 = vadd.f32 %v1162, %v1252
    %1254 = vmatmul.bf16.gmra.mxu0 %v1121
    %v1255 = vpop.f32.mrf.mxu0
    %v1256 = vadd.f32 %v1162, %v1255
    %v1257 = vpop.f32.mrf.mxu0
    %v1258 = vadd.f32 %v1162, %v1257
    %1259 = vmatmul.bf16.gmra.mxu0 %v1122
    %v1260 = vpop.f32.mrf.mxu0
    %v1261 = vadd.f32 %v1162, %v1260
    %v1262 = vpop.f32.mrf.mxu0
    %v1263 = vadd.f32 %v1162, %v1262
    %1264 = vmatmul.bf16.gmra.mxu0 %v1123
    %v1265 = vpop.f32.mrf.mxu0
    %v1266 = vadd.f32 %v1162, %v1265
    %v1267 = vpop.f32.mrf.mxu0
    %v1268 = vadd.f32 %v1162, %v1267
    %1269 = vmatmul.bf16.gmra.mxu0 %v1124
    %v1270 = vpop.f32.mrf.mxu0
    %v1271 = vadd.f32 %v1162, %v1270
    %v1272 = vpop.f32.mrf.mxu0
    %v1273 = vadd.f32 %v1162, %v1272
    %1274 = vmatmul.bf16.gmra.mxu0 %v1125
    %v1275 = vpop.f32.mrf.mxu0
    %v1276 = vadd.f32 %v1162, %v1275
    %v1277 = vpop.f32.mrf.mxu0
    %v1278 = vadd.f32 %v1162, %v1277
    %1279 = vmatmul.bf16.gmra.mxu0 %v1126
    %v1280 = vpop.f32.mrf.mxu0
    %v1281 = vadd.f32 %v1162, %v1280
    %v1282 = vpop.f32.mrf.mxu0
    %v1283 = vadd.f32 %v1162, %v1282
    %1284 = vmatmul.bf16.gmra.mxu0 %v1127
    %v1285 = vpop.f32.mrf.mxu0
    %v1286 = vadd.f32 %v1162, %v1285
    %v1287 = vpop.f32.mrf.mxu0
    %v1288 = vadd.f32 %v1162, %v1287
    %1289 = vmatmul.bf16.gmra.mxu0 %v1128
    %v1290 = vpop.f32.mrf.mxu0
    %v1291 = vadd.f32 %v1162, %v1290
    %v1292 = vpop.f32.mrf.mxu0
    %v1293 = vadd.f32 %v1162, %v1292
    %1294 = vmatmul.bf16.gmra.mxu0 %v1129
    %v1295 = vpop.f32.mrf.mxu0
    %v1296 = vadd.f32 %v1162, %v1295
    %v1297 = vpop.f32.mrf.mxu0
    %v1298 = vadd.f32 %v1162, %v1297
    %1299 = vmatmul.bf16.gmra.mxu0 %v1130
    %v1300 = vpop.f32.mrf.mxu0
    %v1301 = vadd.f32 %v1162, %v1300
    %v1302 = vpop.f32.mrf.mxu0
    %v1303 = vadd.f32 %v1162, %v1302
    %1304 = vmatmul.bf16.gmra.mxu0 %v1131
    %v1305 = vpop.f32.mrf.mxu0
    %v1306 = vadd.f32 %v1162, %v1305
    %v1307 = vpop.f32.mrf.mxu0
    %v1308 = vadd.f32 %v1162, %v1307
    %1309 = vmatmul.bf16.gmra.mxu0 %v1132
    %v1310 = vpop.f32.mrf.mxu0
    %v1311 = vadd.f32 %v1162, %v1310
    %v1312 = vpop.f32.mrf.mxu0
    %v1313 = vadd.f32 %v1162, %v1312
    %1314 = vmatmul.bf16.gmra.mxu0 %v1133
    %v1315 = vpop.f32.mrf.mxu0
    %v1316 = vadd.f32 %v1162, %v1315
    %v1317 = vpop.f32.mrf.mxu0
    %v1318 = vadd.f32 %v1162, %v1317
    %1319 = vmatmul.bf16.gmra.mxu0 %v1134
    %v1320 = vpop.f32.mrf.mxu0
    %v1321 = vadd.f32 %v1162, %v1320
    %v1322 = vpop.f32.mrf.mxu0
    %v1323 = vadd.f32 %v1162, %v1322
    %1324 = vmatmul.bf16.gmra.mxu0 %v1135
    %v1325 = vpop.f32.mrf.mxu0
    %v1326 = vadd.f32 %v1162, %v1325
    %v1327 = vpop.f32.mrf.mxu0
    %v1328 = vadd.f32 %v1162, %v1327
    %1329 = vmatmul.bf16.gmra.mxu0 %v1136
    %v1330 = vpop.f32.mrf.mxu0
    %v1331 = vadd.f32 %v1162, %v1330
    %v1332 = vpop.f32.mrf.mxu0
    %v1333 = vadd.f32 %v1162, %v1332
    %1334 = vmatmul.bf16.gmra.mxu0 %v1137
    %v1335 = vpop.f32.mrf.mxu0
    %v1336 = vadd.f32 %v1162, %v1335
    %v1337 = vpop.f32.mrf.mxu0
    %v1338 = vadd.f32 %v1162, %v1337
    %1339 = vmatmul.bf16.gmra.mxu0 %v1138
    %v1340 = vpop.f32.mrf.mxu0
    %v1341 = vadd.f32 %v1162, %v1340
    %v1342 = vpop.f32.mrf.mxu0
    %v1343 = vadd.f32 %v1162, %v1342
    %1344 = vmatmul.bf16.gmra.mxu0 %v1139
    %v1345 = vpop.f32.mrf.mxu0
    %v1346 = vadd.f32 %v1162, %v1345
    %v1347 = vpop.f32.mrf.mxu0
    %v1348 = vadd.f32 %v1162, %v1347
    %1349 = vmatmul.bf16.gmra.mxu0 %v1140
    %v1350 = vpop.f32.mrf.mxu0
    %v1351 = vadd.f32 %v1162, %v1350
    %v1352 = vpop.f32.mrf.mxu0
    %v1353 = vadd.f32 %v1162, %v1352
    %1354 = vmatmul.bf16.gmra.mxu0 %v1141
    %v1355 = vpop.f32.mrf.mxu0
    %v1356 = vadd.f32 %v1162, %v1355
    %v1357 = vpop.f32.mrf.mxu0
    %v1358 = vadd.f32 %v1162, %v1357
    %1359 = vmatmul.bf16.gmra.mxu0 %v1142
    %v1360 = vpop.f32.mrf.mxu0
    %v1361 = vadd.f32 %v1162, %v1360
    %v1362 = vpop.f32.mrf.mxu0
    %v1363 = vadd.f32 %v1162, %v1362
    %1364 = vmatmul.bf16.gmra.mxu0 %v1143
    %v1365 = vpop.f32.mrf.mxu0
    %v1366 = vadd.f32 %v1162, %v1365
    %v1367 = vpop.f32.mrf.mxu0
    %v1368 = vadd.f32 %v1162, %v1367
    %1369 = vmatmul.bf16.gmra.mxu0 %v1144
    %v1370 = vpop.f32.mrf.mxu0
    %v1371 = vadd.f32 %v1162, %v1370
    %v1372 = vpop.f32.mrf.mxu0
    %v1373 = vadd.f32 %v1162, %v1372
    %1374 = vmatmul.bf16.gmra.mxu0 %v1145
    %v1375 = vpop.f32.mrf.mxu0
    %v1376 = vadd.f32 %v1162, %v1375
    %v1377 = vpop.f32.mrf.mxu0
    %v1378 = vadd.f32 %v1162, %v1377
    %1379 = vdwg.mxu0
    %v1380 = vmax.f32 %v1221, 0.0
    %v1381 = vmax.f32 %v1223, 0.0
    %v1382 = vmax.f32 %v1226, 0.0
    %v1383 = vmax.f32 %v1228, 0.0
    %v1384 = vmax.f32 %v1231, 0.0
    %v1385 = vmax.f32 %v1233, 0.0
    %v1386 = vmax.f32 %v1236, 0.0
    %v1387 = vmax.f32 %v1238, 0.0
    %v1388 = vmax.f32 %v1241, 0.0
    %v1389 = vmax.f32 %v1243, 0.0
    %v1390 = vmax.f32 %v1246, 0.0
    %v1391 = vmax.f32 %v1248, 0.0
    %v1392 = vmax.f32 %v1251, 0.0
    %v1393 = vmax.f32 %v1253, 0.0
    %v1394 = vmax.f32 %v1256, 0.0
    %v1395 = vmax.f32 %v1258, 0.0
    %v1396 = vmax.f32 %v1261, 0.0
    %v1397 = vmax.f32 %v1263, 0.0
    %v1398 = vmax.f32 %v1266, 0.0
    %v1399 = vmax.f32 %v1268, 0.0
    %v1400 = vmax.f32 %v1271, 0.0
    %v1401 = vmax.f32 %v1273, 0.0
    %v1402 = vmax.f32 %v1276, 0.0
    %v1403 = vmax.f32 %v1278, 0.0
    %v1404 = vmax.f32 %v1281, 0.0
    %v1405 = vmax.f32 %v1283, 0.0
    %v1406 = vmax.f32 %v1286, 0.0
    %v1407 = vmax.f32 %v1288, 0.0
    %v1408 = vmax.f32 %v1291, 0.0
    %v1409 = vmax.f32 %v1293, 0.0
    %v1410 = vmax.f32 %v1296, 0.0
    %v1411 = vmax.f32 %v1298, 0.0
    %v1412 = vmax.f32 %v1301, 0.0
    %v1413 = vmax.f32 %v1303, 0.0
    %v1414 = vmax.f32 %v1306, 0.0
    %v1415 = vmax.f32 %v1308, 0.0
    %v1416 = vmax.f32 %v1311, 0.0
    %v1417 = vmax.f32 %v1313, 0.0
    %v1418 = vmax.f32 %v1316, 0.0
    %v1419 = vmax.f32 %v1318, 0.0
    %v1420 = vmax.f32 %v1321, 0.0
    %v1421 = vmax.f32 %v1323, 0.0
    %v1422 = vmax.f32 %v1326, 0.0
    %v1423 = vmax.f32 %v1328, 0.0
    %v1424 = vmax.f32 %v1331, 0.0
    %v1425 = vmax.f32 %v1333, 0.0
    %v1426 = vmax.f32 %v1336, 0.0
    %v1427 = vmax.f32 %v1338, 0.0
    %v1428 = vmax.f32 %v1341, 0.0
    %v1429 = vmax.f32 %v1343, 0.0
    %v1430 = vmax.f32 %v1346, 0.0
    %v1431 = vmax.f32 %v1348, 0.0
    %v1432 = vmax.f32 %v1351, 0.0
    %v1433 = vmax.f32 %v1353, 0.0
    %v1434 = vmax.f32 %v1356, 0.0
    %v1435 = vmax.f32 %v1358, 0.0
    %v1436 = vmax.f32 %v1361, 0.0
    %v1437 = vmax.f32 %v1363, 0.0
    %v1438 = vmax.f32 %v1366, 0.0
    %v1439 = vmax.f32 %v1368, 0.0
    %v1440 = vmax.f32 %v1371, 0.0
    %v1441 = vmax.f32 %v1373, 0.0
    %v1442 = vmax.f32 %v1376, 0.0
    %v1443 = vmax.f32 %v1378, 0.0
    %v1444 = vpack.c.bf16 %v1381, %v1380
    %v1445 = vpack.c.bf16 %v1383, %v1382
    %v1446 = vpack.c.bf16 %v1385, %v1384
    %v1447 = vpack.c.bf16 %v1387, %v1386
    %v1448 = vpack.c.bf16 %v1389, %v1388
    %v1449 = vpack.c.bf16 %v1391, %v1390
    %v1450 = vpack.c.bf16 %v1393, %v1392
    %v1451 = vpack.c.bf16 %v1395, %v1394
    %v1452 = vpack.c.bf16 %v1397, %v1396
    %v1453 = vpack.c.bf16 %v1399, %v1398
    %v1454 = vpack.c.bf16 %v1401, %v1400
    %v1455 = vpack.c.bf16 %v1403, %v1402
    %v1456 = vpack.c.bf16 %v1405, %v1404
    %v1457 = vpack.c.bf16 %v1407, %v1406
    %v1458 = vpack.c.bf16 %v1409, %v1408
    %v1459 = vpack.c.bf16 %v1411, %v1410
    %v1460 = vpack.c.bf16 %v1413, %v1412
    %v1461 = vpack.c.bf16 %v1415, %v1414
    %v1462 = vpack.c.bf16 %v1417, %v1416
    %v1463 = vpack.c.bf16 %v1419, %v1418
    %v1464 = vpack.c.bf16 %v1421, %v1420
    %v1465 = vpack.c.bf16 %v1423, %v1422
    %v1466 = vpack.c.bf16 %v1425, %v1424
    %v1467 = vpack.c.bf16 %v1427, %v1426
    %v1468 = vpack.c.bf16 %v1429, %v1428
    %v1469 = vpack.c.bf16 %v1431, %v1430
    %v1470 = vpack.c.bf16 %v1433, %v1432
    %v1471 = vpack.c.bf16 %v1435, %v1434
    %v1472 = vpack.c.bf16 %v1437, %v1436
    %v1473 = vpack.c.bf16 %v1439, %v1438
    %v1474 = vpack.c.bf16 %v1441, %v1440
    %v1475 = vpack.c.bf16 %v1443, %v1442
    %s1476 = scalar_lea.vmem %s3, 64
    %v1477 = vld [vmem:[%s1476] sm:$0xf]
    %v1478 = vld [vmem:[%s1476 + $0x4] sm:$0xf]
    %v1479 = vld [vmem:[%s1476 + $0x8] sm:$0xf]
    %v1480 = vld [vmem:[%s1476 + $0xc] sm:$0xf]
    %v1481 = vld [vmem:[%s1476 + $0x10] sm:$0xf]
    %v1482 = vld [vmem:[%s1476 + $0x14] sm:$0xf]
    %v1483 = vld [vmem:[%s1476 + $0x18] sm:$0xf]
    %v1484 = vld [vmem:[%s1476 + $0x1c] sm:$0xf]
    %v1485 = vld [vmem:[%s1476 + $0x20] sm:$0xf]
    %v1486 = vld [vmem:[%s1476 + $0x24] sm:$0xf]
    %v1487 = vld [vmem:[%s1476 + $0x28] sm:$0xf]
    %v1488 = vld [vmem:[%s1476 + $0x2c] sm:$0xf]
    %v1489 = vld [vmem:[%s1476 + $0x30] sm:$0xf]
    %v1490 = vld [vmem:[%s1476 + $0x34] sm:$0xf]
    %v1491 = vld [vmem:[%s1476 + $0x38] sm:$0xf]
    %v1492 = vld [vmem:[%s1476 + $0x3c] sm:$0xf]
    %v1493 = vperm.slane %v22, 2
    %v1510 = vunpack.c.l.b16 %v1477
    %v1511 = vunpack.c.l.b16 %v1478
    %v1512 = vunpack.c.l.b16 %v1479
    %v1513 = vunpack.c.l.b16 %v1480
    %v1514 = vunpack.c.l.b16 %v1481
    %v1515 = vunpack.c.l.b16 %v1482
    %v1516 = vunpack.c.l.b16 %v1483
    %v1517 = vunpack.c.l.b16 %v1484
    %v1518 = vunpack.c.l.b16 %v1485
    %v1519 = vunpack.c.l.b16 %v1486
    %v1520 = vunpack.c.l.b16 %v1487
    %v1521 = vunpack.c.l.b16 %v1488
    %v1522 = vunpack.c.l.b16 %v1489
    %v1523 = vunpack.c.l.b16 %v1490
    %v1524 = vunpack.c.l.b16 %v1491
    %v1525 = vunpack.c.l.b16 %v1492
    %v1526 = vpack.c.b16 %v1511, %v1510
    %v1527 = vpack.c.b16 %v1513, %v1512
    %v1528 = vpack.c.b16 %v1515, %v1514
    %v1529 = vpack.c.b16 %v1517, %v1516
    %v1530 = vpack.c.b16 %v1519, %v1518
    %v1531 = vpack.c.b16 %v1521, %v1520
    %v1532 = vpack.c.b16 %v1523, %v1522
    %v1533 = vpack.c.b16 %v1525, %v1524
    %1542 = vmatpush.bf16.msra.mxu0 %v1533
    %1543 = vmatpush.bf16.msra.mxu0 %v1532
    %1544 = vmatpush.bf16.msra.mxu0 %v1531
    %1545 = vmatpush.bf16.msra.mxu0 %v1530
    %1546 = vmatpush.bf16.msra.mxu0 %v1529
    %1547 = vmatpush.bf16.msra.mxu0 %v1528
    %1548 = vmatpush.bf16.msra.mxu0 %v1527
    %1549 = vmatpush.bf16.msra.mxu0 %v1526
    %1550 = vmatmul.bf16.gmra.mxu0 %v1444
    %v1551 = vpop.f32.mrf.mxu0
    %v1552 = vadd.f32 %v1493, %v1551
    %v1553 = vpop.f32.mrf.mxu0
    %v1554 = vadd.f32 %v1493, %v1553
    %1555 = vmatmul.bf16.gmra.mxu0 %v1445
    %v1556 = vpop.f32.mrf.mxu0
    %v1557 = vadd.f32 %v1493, %v1556
    %v1558 = vpop.f32.mrf.mxu0
    %v1559 = vadd.f32 %v1493, %v1558
    %1560 = vmatmul.bf16.gmra.mxu0 %v1446
    %v1561 = vpop.f32.mrf.mxu0
    %v1562 = vadd.f32 %v1493, %v1561
    %v1563 = vpop.f32.mrf.mxu0
    %v1564 = vadd.f32 %v1493, %v1563
    %1565 = vmatmul.bf16.gmra.mxu0 %v1447
    %v1566 = vpop.f32.mrf.mxu0
    %v1567 = vadd.f32 %v1493, %v1566
    %v1568 = vpop.f32.mrf.mxu0
    %v1569 = vadd.f32 %v1493, %v1568
    %1570 = vmatmul.bf16.gmra.mxu0 %v1448
    %v1571 = vpop.f32.mrf.mxu0
    %v1572 = vadd.f32 %v1493, %v1571
    %v1573 = vpop.f32.mrf.mxu0
    %v1574 = vadd.f32 %v1493, %v1573
    %1575 = vmatmul.bf16.gmra.mxu0 %v1449
    %v1576 = vpop.f32.mrf.mxu0
    %v1577 = vadd.f32 %v1493, %v1576
    %v1578 = vpop.f32.mrf.mxu0
    %v1579 = vadd.f32 %v1493, %v1578
    %1580 = vmatmul.bf16.gmra.mxu0 %v1450
    %v1581 = vpop.f32.mrf.mxu0
    %v1582 = vadd.f32 %v1493, %v1581
    %v1583 = vpop.f32.mrf.mxu0
    %v1584 = vadd.f32 %v1493, %v1583
    %1585 = vmatmul.bf16.gmra.mxu0 %v1451
    %v1586 = vpop.f32.mrf.mxu0
    %v1587 = vadd.f32 %v1493, %v1586
    %v1588 = vpop.f32.mrf.mxu0
    %v1589 = vadd.f32 %v1493, %v1588
    %1590 = vmatmul.bf16.gmra.mxu0 %v1452
    %v1591 = vpop.f32.mrf.mxu0
    %v1592 = vadd.f32 %v1493, %v1591
    %v1593 = vpop.f32.mrf.mxu0
    %v1594 = vadd.f32 %v1493, %v1593
    %1595 = vmatmul.bf16.gmra.mxu0 %v1453
    %v1596 = vpop.f32.mrf.mxu0
    %v1597 = vadd.f32 %v1493, %v1596
    %v1598 = vpop.f32.mrf.mxu0
    %v1599 = vadd.f32 %v1493, %v1598
    %1600 = vmatmul.bf16.gmra.mxu0 %v1454
    %v1601 = vpop.f32.mrf.mxu0
    %v1602 = vadd.f32 %v1493, %v1601
    %v1603 = vpop.f32.mrf.mxu0
    %v1604 = vadd.f32 %v1493, %v1603
    %1605 = vmatmul.bf16.gmra.mxu0 %v1455
    %v1606 = vpop.f32.mrf.mxu0
    %v1607 = vadd.f32 %v1493, %v1606
    %v1608 = vpop.f32.mrf.mxu0
    %v1609 = vadd.f32 %v1493, %v1608
    %1610 = vmatmul.bf16.gmra.mxu0 %v1456
    %v1611 = vpop.f32.mrf.mxu0
    %v1612 = vadd.f32 %v1493, %v1611
    %v1613 = vpop.f32.mrf.mxu0
    %v1614 = vadd.f32 %v1493, %v1613
    %1615 = vmatmul.bf16.gmra.mxu0 %v1457
    %v1616 = vpop.f32.mrf.mxu0
    %v1617 = vadd.f32 %v1493, %v1616
    %v1618 = vpop.f32.mrf.mxu0
    %v1619 = vadd.f32 %v1493, %v1618
    %1620 = vmatmul.bf16.gmra.mxu0 %v1458
    %v1621 = vpop.f32.mrf.mxu0
    %v1622 = vadd.f32 %v1493, %v1621
    %v1623 = vpop.f32.mrf.mxu0
    %v1624 = vadd.f32 %v1493, %v1623
    %1625 = vmatmul.bf16.gmra.mxu0 %v1459
    %v1626 = vpop.f32.mrf.mxu0
    %v1627 = vadd.f32 %v1493, %v1626
    %v1628 = vpop.f32.mrf.mxu0
    %v1629 = vadd.f32 %v1493, %v1628
    %1630 = vmatmul.bf16.gmra.mxu0 %v1460
    %v1631 = vpop.f32.mrf.mxu0
    %v1632 = vadd.f32 %v1493, %v1631
    %v1633 = vpop.f32.mrf.mxu0
    %v1634 = vadd.f32 %v1493, %v1633
    %1635 = vmatmul.bf16.gmra.mxu0 %v1461
    %v1636 = vpop.f32.mrf.mxu0
    %v1637 = vadd.f32 %v1493, %v1636
    %v1638 = vpop.f32.mrf.mxu0
    %v1639 = vadd.f32 %v1493, %v1638
    %1640 = vmatmul.bf16.gmra.mxu0 %v1462
    %v1641 = vpop.f32.mrf.mxu0
    %v1642 = vadd.f32 %v1493, %v1641
    %v1643 = vpop.f32.mrf.mxu0
    %v1644 = vadd.f32 %v1493, %v1643
    %1645 = vmatmul.bf16.gmra.mxu0 %v1463
    %v1646 = vpop.f32.mrf.mxu0
    %v1647 = vadd.f32 %v1493, %v1646
    %v1648 = vpop.f32.mrf.mxu0
    %v1649 = vadd.f32 %v1493, %v1648
    %1650 = vmatmul.bf16.gmra.mxu0 %v1464
    %v1651 = vpop.f32.mrf.mxu0
    %v1652 = vadd.f32 %v1493, %v1651
    %v1653 = vpop.f32.mrf.mxu0
    %v1654 = vadd.f32 %v1493, %v1653
    %1655 = vmatmul.bf16.gmra.mxu0 %v1465
    %v1656 = vpop.f32.mrf.mxu0
    %v1657 = vadd.f32 %v1493, %v1656
    %v1658 = vpop.f32.mrf.mxu0
    %v1659 = vadd.f32 %v1493, %v1658
    %1660 = vmatmul.bf16.gmra.mxu0 %v1466
    %v1661 = vpop.f32.mrf.mxu0
    %v1662 = vadd.f32 %v1493, %v1661
    %v1663 = vpop.f32.mrf.mxu0
    %v1664 = vadd.f32 %v1493, %v1663
    %1665 = vmatmul.bf16.gmra.mxu0 %v1467
    %v1666 = vpop.f32.mrf.mxu0
    %v1667 = vadd.f32 %v1493, %v1666
    %v1668 = vpop.f32.mrf.mxu0
    %v1669 = vadd.f32 %v1493, %v1668
    %1670 = vmatmul.bf16.gmra.mxu0 %v1468
    %v1671 = vpop.f32.mrf.mxu0
    %v1672 = vadd.f32 %v1493, %v1671
    %v1673 = vpop.f32.mrf.mxu0
    %v1674 = vadd.f32 %v1493, %v1673
    %1675 = vmatmul.bf16.gmra.mxu0 %v1469
    %v1676 = vpop.f32.mrf.mxu0
    %v1677 = vadd.f32 %v1493, %v1676
    %v1678 = vpop.f32.mrf.mxu0
    %v1679 = vadd.f32 %v1493, %v1678
    %1680 = vmatmul.bf16.gmra.mxu0 %v1470
    %v1681 = vpop.f32.mrf.mxu0
    %v1682 = vadd.f32 %v1493, %v1681
    %v1683 = vpop.f32.mrf.mxu0
    %v1684 = vadd.f32 %v1493, %v1683
    %1685 = vmatmul.bf16.gmra.mxu0 %v1471
    %v1686 = vpop.f32.mrf.mxu0
    %v1687 = vadd.f32 %v1493, %v1686
    %v1688 = vpop.f32.mrf.mxu0
    %v1689 = vadd.f32 %v1493, %v1688
    %1690 = vmatmul.bf16.gmra.mxu0 %v1472
    %v1691 = vpop.f32.mrf.mxu0
    %v1692 = vadd.f32 %v1493, %v1691
    %v1693 = vpop.f32.mrf.mxu0
    %v1694 = vadd.f32 %v1493, %v1693
    %1695 = vmatmul.bf16.gmra.mxu0 %v1473
    %v1696 = vpop.f32.mrf.mxu0
    %v1697 = vadd.f32 %v1493, %v1696
    %v1698 = vpop.f32.mrf.mxu0
    %v1699 = vadd.f32 %v1493, %v1698
    %1700 = vmatmul.bf16.gmra.mxu0 %v1474
    %v1701 = vpop.f32.mrf.mxu0
    %v1702 = vadd.f32 %v1493, %v1701
    %v1703 = vpop.f32.mrf.mxu0
    %v1704 = vadd.f32 %v1493, %v1703
    %1705 = vmatmul.bf16.gmra.mxu0 %v1475
    %v1706 = vpop.f32.mrf.mxu0
    %v1707 = vadd.f32 %v1493, %v1706
    %v1708 = vpop.f32.mrf.mxu0
    %v1709 = vadd.f32 %v1493, %v1708
    %1710 = vdwg.mxu0
    %v1711 = vmax.f32 %v1552, 0.0
    %v1712 = vmax.f32 %v1554, 0.0
    %v1713 = vmax.f32 %v1557, 0.0
    %v1714 = vmax.f32 %v1559, 0.0
    %v1715 = vmax.f32 %v1562, 0.0
    %v1716 = vmax.f32 %v1564, 0.0
    %v1717 = vmax.f32 %v1567, 0.0
    %v1718 = vmax.f32 %v1569, 0.0
    %v1719 = vmax.f32 %v1572, 0.0
    %v1720 = vmax.f32 %v1574, 0.0
    %v1721 = vmax.f32 %v1577, 0.0
    %v1722 = vmax.f32 %v1579, 0.0
    %v1723 = vmax.f32 %v1582, 0.0
    %v1724 = vmax.f32 %v1584, 0.0
    %v1725 = vmax.f32 %v1587, 0.0
    %v1726 = vmax.f32 %v1589, 0.0
    %v1727 = vmax.f32 %v1592, 0.0
    %v1728 = vmax.f32 %v1594, 0.0
    %v1729 = vmax.f32 %v1597, 0.0
    %v1730 = vmax.f32 %v1599, 0.0
    %v1731 = vmax.f32 %v1602, 0.0
    %v1732 = vmax.f32 %v1604, 0.0
    %v1733 = vmax.f32 %v1607, 0.0
    %v1734 = vmax.f32 %v1609, 0.0
    %v1735 = vmax.f32 %v1612, 0.0
    %v1736 = vmax.f32 %v1614, 0.0
    %v1737 = vmax.f32 %v1617, 0.0
    %v1738 = vmax.f32 %v1619, 0.0
    %v1739 = vmax.f32 %v1622, 0.0
    %v1740 = vmax.f32 %v1624, 0.0
    %v1741 = vmax.f32 %v1627, 0.0
    %v1742 = vmax.f32 %v1629, 0.0
    %v1743 = vmax.f32 %v1632, 0.0
    %v1744 = vmax.f32 %v1634, 0.0
    %v1745 = vmax.f32 %v1637, 0.0
    %v1746 = vmax.f32 %v1639, 0.0
    %v1747 = vmax.f32 %v1642, 0.0
    %v1748 = vmax.f32 %v1644, 0.0
    %v1749 = vmax.f32 %v1647, 0.0
    %v1750 = vmax.f32 %v1649, 0.0
    %v1751 = vmax.f32 %v1652, 0.0
    %v1752 = vmax.f32 %v1654, 0.0
    %v1753 = vmax.f32 %v1657, 0.0
    %v1754 = vmax.f32 %v1659, 0.0
    %v1755 = vmax.f32 %v1662, 0.0
    %v1756 = vmax.f32 %v1664, 0.0
    %v1757 = vmax.f32 %v1667, 0.0
    %v1758 = vmax.f32 %v1669, 0.0
    %v1759 = vmax.f32 %v1672, 0.0
    %v1760 = vmax.f32 %v1674, 0.0
    %v1761 = vmax.f32 %v1677, 0.0
    %v1762 = vmax.f32 %v1679, 0.0
    %v1763 = vmax.f32 %v1682, 0.0
    %v1764 = vmax.f32 %v1684, 0.0
    %v1765 = vmax.f32 %v1687, 0.0
    %v1766 = vmax.f32 %v1689, 0.0
    %v1767 = vmax.f32 %v1692, 0.0
    %v1768 = vmax.f32 %v1694, 0.0
    %v1769 = vmax.f32 %v1697, 0.0
    %v1770 = vmax.f32 %v1699, 0.0
    %v1771 = vmax.f32 %v1702, 0.0
    %v1772 = vmax.f32 %v1704, 0.0
    %v1773 = vmax.f32 %v1707, 0.0
    %v1774 = vmax.f32 %v1709, 0.0
    %v1775 = vlaneseq
    %v1776 = vand.u32 %v1775, 127
    %v1777 = vadd.s32 %v1776, 128
    %v1778 = vadd.s32 %v1776, 256
    %v1779 = vadd.s32 %v1776, 384
    %v1780 = vlaneseq
    %v1781 = vshrl.u32 %v1780, 7
    %v1782 = vadd.s32 %v1781, 8
    %v1783 = vadd.s32 %v1781, 16
    %v1784 = vadd.s32 %v1781, 24
    %v1785 = vadd.s32 %v1781, 32
    %v1786 = vadd.s32 %v1781, 40
    %v1787 = vadd.s32 %v1781, 48
    %v1788 = vadd.s32 %v1781, 56
    %v1789 = vmul.u32 %v1781, 8
    %v1790 = vmul.u32 %v1782, 8
    %v1791 = vmul.u32 %v1783, 8
    %v1792 = vmul.u32 %v1784, 8
    %v1793 = vmul.u32 %v1785, 8
    %v1794 = vmul.u32 %v1786, 8
    %v1795 = vmul.u32 %v1787, 8
    %v1796 = vmul.u32 %v1788, 8
    %vm1797 = vcmp.ge.s32.totalorder %v1776, %v1789
    %vm1798 = vcmp.ge.s32.totalorder %v1777, %v1789
    %vm1799 = vcmp.ge.s32.totalorder %v1778, %v1789
    %vm1800 = vcmp.ge.s32.totalorder %v1779, %v1789
    %vm1801 = vcmp.ge.s32.totalorder %v1776, %v1790
    %vm1802 = vcmp.ge.s32.totalorder %v1777, %v1790
    %vm1803 = vcmp.ge.s32.totalorder %v1778, %v1790
    %vm1804 = vcmp.ge.s32.totalorder %v1779, %v1790
    %vm1805 = vcmp.ge.s32.totalorder %v1776, %v1791
    %vm1806 = vcmp.ge.s32.totalorder %v1777, %v1791
    %vm1807 = vcmp.ge.s32.totalorder %v1778, %v1791
    %vm1808 = vcmp.ge.s32.totalorder %v1779, %v1791
    %vm1809 = vcmp.ge.s32.totalorder %v1776, %v1792
    %vm1810 = vcmp.ge.s32.totalorder %v1777, %v1792
    %vm1811 = vcmp.ge.s32.totalorder %v1778, %v1792
    %vm1812 = vcmp.ge.s32.totalorder %v1779, %v1792
    %vm1813 = vcmp.ge.s32.totalorder %v1776, %v1793
    %vm1814 = vcmp.ge.s32.totalorder %v1777, %v1793
    %vm1815 = vcmp.ge.s32.totalorder %v1778, %v1793
    %vm1816 = vcmp.ge.s32.totalorder %v1779, %v1793
    %vm1817 = vcmp.ge.s32.totalorder %v1776, %v1794
    %vm1818 = vcmp.ge.s32.totalorder %v1777, %v1794
    %vm1819 = vcmp.ge.s32.totalorder %v1778, %v1794
    %vm1820 = vcmp.ge.s32.totalorder %v1779, %v1794
    %vm1821 = vcmp.ge.s32.totalorder %v1776, %v1795
    %vm1822 = vcmp.ge.s32.totalorder %v1777, %v1795
    %vm1823 = vcmp.ge.s32.totalorder %v1778, %v1795
    %vm1824 = vcmp.ge.s32.totalorder %v1779, %v1795
    %vm1825 = vcmp.ge.s32.totalorder %v1776, %v1796
    %vm1826 = vcmp.ge.s32.totalorder %v1777, %v1796
    %vm1827 = vcmp.ge.s32.totalorder %v1778, %v1796
    %vm1828 = vcmp.ge.s32.totalorder %v1779, %v1796
    %v1829 = vadd.s32 %v1789, 8
    %v1830 = vadd.s32 %v1790, 8
    %v1831 = vadd.s32 %v1791, 8
    %v1832 = vadd.s32 %v1792, 8
    %v1833 = vadd.s32 %v1793, 8
    %v1834 = vadd.s32 %v1794, 8
    %v1835 = vadd.s32 %v1795, 8
    %v1836 = vadd.s32 %v1796, 8
    %vm1837 = vcmp.lt.s32.totalorder %v1776, %v1829
    %vm1838 = vcmp.lt.s32.totalorder %v1777, %v1829
    %vm1839 = vcmp.lt.s32.totalorder %v1778, %v1829
    %vm1840 = vcmp.lt.s32.totalorder %v1779, %v1829
    %vm1841 = vcmp.lt.s32.totalorder %v1776, %v1830
    %vm1842 = vcmp.lt.s32.totalorder %v1777, %v1830
    %vm1843 = vcmp.lt.s32.totalorder %v1778, %v1830
    %vm1844 = vcmp.lt.s32.totalorder %v1779, %v1830
    %vm1845 = vcmp.lt.s32.totalorder %v1776, %v1831
    %vm1846 = vcmp.lt.s32.totalorder %v1777, %v1831
    %vm1847 = vcmp.lt.s32.totalorder %v1778, %v1831
    %vm1848 = vcmp.lt.s32.totalorder %v1779, %v1831
    %vm1849 = vcmp.lt.s32.totalorder %v1776, %v1832
    %vm1850 = vcmp.lt.s32.totalorder %v1777, %v1832
    %vm1851 = vcmp.lt.s32.totalorder %v1778, %v1832
    %vm1852 = vcmp.lt.s32.totalorder %v1779, %v1832
    %vm1853 = vcmp.lt.s32.totalorder %v1776, %v1833
    %vm1854 = vcmp.lt.s32.totalorder %v1777, %v1833
    %vm1855 = vcmp.lt.s32.totalorder %v1778, %v1833
    %vm1856 = vcmp.lt.s32.totalorder %v1779, %v1833
    %vm1857 = vcmp.lt.s32.totalorder %v1776, %v1834
    %vm1858 = vcmp.lt.s32.totalorder %v1777, %v1834
    %vm1859 = vcmp.lt.s32.totalorder %v1778, %v1834
    %vm1860 = vcmp.lt.s32.totalorder %v1779, %v1834
    %vm1861 = vcmp.lt.s32.totalorder %v1776, %v1835
    %vm1862 = vcmp.lt.s32.totalorder %v1777, %v1835
    %vm1863 = vcmp.lt.s32.totalorder %v1778, %v1835
    %vm1864 = vcmp.lt.s32.totalorder %v1779, %v1835
    %vm1865 = vcmp.lt.s32.totalorder %v1776, %v1836
    %vm1866 = vcmp.lt.s32.totalorder %v1777, %v1836
    %vm1867 = vcmp.lt.s32.totalorder %v1778, %v1836
    %vm1868 = vcmp.lt.s32.totalorder %v1779, %v1836
    %vm1869 = vmand %vm1797, %vm1837
    %vm1870 = vmand %vm1798, %vm1838
    %vm1871 = vmand %vm1799, %vm1839
    %vm1872 = vmand %vm1800, %vm1840
    %vm1873 = vmand %vm1801, %vm1841
    %vm1874 = vmand %vm1802, %vm1842
    %vm1875 = vmand %vm1803, %vm1843
    %vm1876 = vmand %vm1804, %vm1844
    %vm1877 = vmand %vm1805, %vm1845
    %vm1878 = vmand %vm1806, %vm1846
    %vm1879 = vmand %vm1807, %vm1847
    %vm1880 = vmand %vm1808, %vm1848
    %vm1881 = vmand %vm1809, %vm1849
    %vm1882 = vmand %vm1810, %vm1850
    %vm1883 = vmand %vm1811, %vm1851
    %vm1884 = vmand %vm1812, %vm1852
    %vm1885 = vmand %vm1813, %vm1853
    %vm1886 = vmand %vm1814, %vm1854
    %vm1887 = vmand %vm1815, %vm1855
    %vm1888 = vmand %vm1816, %vm1856
    %vm1889 = vmand %vm1817, %vm1857
    %vm1890 = vmand %vm1818, %vm1858
    %vm1891 = vmand %vm1819, %vm1859
    %vm1892 = vmand %vm1820, %vm1860
    %vm1893 = vmand %vm1821, %vm1861
    %vm1894 = vmand %vm1822, %vm1862
    %vm1895 = vmand %vm1823, %vm1863
    %vm1896 = vmand %vm1824, %vm1864
    %vm1897 = vmand %vm1825, %vm1865
    %vm1898 = vmand %vm1826, %vm1866
    %vm1899 = vmand %vm1827, %vm1867
    %vm1900 = vmand %vm1828, %vm1868
    %v1901 = vsel %vm1869, 1.0, 0.0
    %v1902 = vsel %vm1870, 1.0, 0.0
    %v1903 = vsel %vm1871, 1.0, 0.0
    %v1904 = vsel %vm1872, 1.0, 0.0
    %v1905 = vsel %vm1873, 1.0, 0.0
    %v1906 = vsel %vm1874, 1.0, 0.0
    %v1907 = vsel %vm1875, 1.0, 0.0
    %v1908 = vsel %vm1876, 1.0, 0.0
    %v1909 = vsel %vm1877, 1.0, 0.0
    %v1910 = vsel %vm1878, 1.0, 0.0
    %v1911 = vsel %vm1879, 1.0, 0.0
    %v1912 = vsel %vm1880, 1.0, 0.0
    %v1913 = vsel %vm1881, 1.0, 0.0
    %v1914 = vsel %vm1882, 1.0, 0.0
    %v1915 = vsel %vm1883, 1.0, 0.0
    %v1916 = vsel %vm1884, 1.0, 0.0
    %v1917 = vsel %vm1885, 1.0, 0.0
    %v1918 = vsel %vm1886, 1.0, 0.0
    %v1919 = vsel %vm1887, 1.0, 0.0
    %v1920 = vsel %vm1888, 1.0, 0.0
    %v1921 = vsel %vm1889, 1.0, 0.0
    %v1922 = vsel %vm1890, 1.0, 0.0
    %v1923 = vsel %vm1891, 1.0, 0.0
    %v1924 = vsel %vm1892, 1.0, 0.0
    %v1925 = vsel %vm1893, 1.0, 0.0
    %v1926 = vsel %vm1894, 1.0, 0.0
    %v1927 = vsel %vm1895, 1.0, 0.0
    %v1928 = vsel %vm1896, 1.0, 0.0
    %v1929 = vsel %vm1897, 1.0, 0.0
    %v1930 = vsel %vm1898, 1.0, 0.0
    %v1931 = vsel %vm1899, 1.0, 0.0
    %v1932 = vsel %vm1900, 1.0, 0.0
    %v1933 = vpack.c.bf16 %v1905, %v1901
    %v1934 = vpack.c.bf16 %v1906, %v1902
    %v1935 = vpack.c.bf16 %v1907, %v1903
    %v1936 = vpack.c.bf16 %v1908, %v1904
    %v1937 = vpack.c.bf16 %v1913, %v1909
    %v1938 = vpack.c.bf16 %v1914, %v1910
    %v1939 = vpack.c.bf16 %v1915, %v1911
    %v1940 = vpack.c.bf16 %v1916, %v1912
    %v1941 = vpack.c.bf16 %v1921, %v1917
    %v1942 = vpack.c.bf16 %v1922, %v1918
    %v1943 = vpack.c.bf16 %v1923, %v1919
    %v1944 = vpack.c.bf16 %v1924, %v1920
    %v1945 = vpack.c.bf16 %v1929, %v1925
    %v1946 = vpack.c.bf16 %v1930, %v1926
    %v1947 = vpack.c.bf16 %v1931, %v1927
    %v1948 = vpack.c.bf16 %v1932, %v1928
    %v1949 = vpack.c.bf16 %v1712, %v1711
    %v1950 = vpack.c.bf16 %v1714, %v1713
    %v1951 = vpack.c.bf16 %v1716, %v1715
    %v1952 = vpack.c.bf16 %v1718, %v1717
    %v1953 = vpack.c.bf16 %v1720, %v1719
    %v1954 = vpack.c.bf16 %v1722, %v1721
    %v1955 = vpack.c.bf16 %v1724, %v1723
    %v1956 = vpack.c.bf16 %v1726, %v1725
    %v1957 = vpack.c.bf16 %v1728, %v1727
    %v1958 = vpack.c.bf16 %v1730, %v1729
    %v1959 = vpack.c.bf16 %v1732, %v1731
    %v1960 = vpack.c.bf16 %v1734, %v1733
    %v1961 = vpack.c.bf16 %v1736, %v1735
    %v1962 = vpack.c.bf16 %v1738, %v1737
    %v1963 = vpack.c.bf16 %v1740, %v1739
    %v1964 = vpack.c.bf16 %v1742, %v1741
    %v1965 = vpack.c.bf16 %v1744, %v1743
    %v1966 = vpack.c.bf16 %v1746, %v1745
    %v1967 = vpack.c.bf16 %v1748, %v1747
    %v1968 = vpack.c.bf16 %v1750, %v1749
    %v1969 = vpack.c.bf16 %v1752, %v1751
    %v1970 = vpack.c.bf16 %v1754, %v1753
    %v1971 = vpack.c.bf16 %v1756, %v1755
    %v1972 = vpack.c.bf16 %v1758, %v1757
    %v1973 = vpack.c.bf16 %v1760, %v1759
    %v1974 = vpack.c.bf16 %v1762, %v1761
    %v1975 = vpack.c.bf16 %v1764, %v1763
    %v1976 = vpack.c.bf16 %v1766, %v1765
    %v1977 = vpack.c.bf16 %v1768, %v1767
    %v1978 = vpack.c.bf16 %v1770, %v1769
    %v1979 = vpack.c.bf16 %v1772, %v1771
    %v1980 = vpack.c.bf16 %v1774, %v1773
    %1981 = vmatpush.bf16.msra.mxu0 %v1956
    %1982 = vmatpush.bf16.msra.mxu0 %v1955
    %1983 = vmatpush.bf16.msra.mxu0 %v1954
    %1984 = vmatpush.bf16.msra.mxu0 %v1953
    %1985 = vmatpush.bf16.msra.mxu0 %v1952
    %1986 = vmatpush.bf16.msra.mxu0 %v1951
    %1987 = vmatpush.bf16.msra.mxu0 %v1950
    %1988 = vmatpush.bf16.msra.mxu0 %v1949
    %1989 = vmatmul.bf16.gmra.mxu0 %v1933
    %v1990 = vpop.f32.mrf.mxu0
    %v1991 = vadd.f32 0.0, %v1990
    %v1992 = vpop.f32.mrf.mxu0
    %v1993 = vadd.f32 0.0, %v1992
    %1994 = vmatmul.bf16.gmra.mxu0 %v1937
    %v1995 = vpop.f32.mrf.mxu0
    %v1996 = vadd.f32 0.0, %v1995
    %v1997 = vpop.f32.mrf.mxu0
    %v1998 = vadd.f32 0.0, %v1997
    %1999 = vmatmul.bf16.gmra.mxu0 %v1941
    %v2000 = vpop.f32.mrf.mxu0
    %v2001 = vadd.f32 0.0, %v2000
    %v2002 = vpop.f32.mrf.mxu0
    %v2003 = vadd.f32 0.0, %v2002
    %2004 = vmatmul.bf16.gmra.mxu0 %v1945
    %v2005 = vpop.f32.mrf.mxu0
    %v2006 = vadd.f32 0.0, %v2005
    %v2007 = vpop.f32.mrf.mxu0
    %v2008 = vadd.f32 0.0, %v2007
    %2009 = vdwg.mxu0
    %2010 = vmatpush.bf16.msra.mxu0 %v1964
    %2011 = vmatpush.bf16.msra.mxu0 %v1963
    %2012 = vmatpush.bf16.msra.mxu0 %v1962
    %2013 = vmatpush.bf16.msra.mxu0 %v1961
    %2014 = vmatpush.bf16.msra.mxu0 %v1960
    %2015 = vmatpush.bf16.msra.mxu0 %v1959
    %2016 = vmatpush.bf16.msra.mxu0 %v1958
    %2017 = vmatpush.bf16.msra.mxu0 %v1957
    %2018 = vmatmul.bf16.gmra.mxu0 %v1934
    %v2019 = vpop.f32.mrf.mxu0
    %v2020 = vadd.f32 %v1991, %v2019
    %v2021 = vpop.f32.mrf.mxu0
    %v2022 = vadd.f32 %v1993, %v2021
    %2023 = vmatmul.bf16.gmra.mxu0 %v1938
    %v2024 = vpop.f32.mrf.mxu0
    %v2025 = vadd.f32 %v1996, %v2024
    %v2026 = vpop.f32.mrf.mxu0
    %v2027 = vadd.f32 %v1998, %v2026
    %2028 = vmatmul.bf16.gmra.mxu0 %v1942
    %v2029 = vpop.f32.mrf.mxu0
    %v2030 = vadd.f32 %v2001, %v2029
    %v2031 = vpop.f32.mrf.mxu0
    %v2032 = vadd.f32 %v2003, %v2031
    %2033 = vmatmul.bf16.gmra.mxu0 %v1946
    %v2034 = vpop.f32.mrf.mxu0
    %v2035 = vadd.f32 %v2006, %v2034
    %v2036 = vpop.f32.mrf.mxu0
    %v2037 = vadd.f32 %v2008, %v2036
    %2038 = vdwg.mxu0
    %2039 = vmatpush.bf16.msra.mxu0 %v1972
    %2040 = vmatpush.bf16.msra.mxu0 %v1971
    %2041 = vmatpush.bf16.msra.mxu0 %v1970
    %2042 = vmatpush.bf16.msra.mxu0 %v1969
    %2043 = vmatpush.bf16.msra.mxu0 %v1968
    %2044 = vmatpush.bf16.msra.mxu0 %v1967
    %2045 = vmatpush.bf16.msra.mxu0 %v1966
    %2046 = vmatpush.bf16.msra.mxu0 %v1965
    %2047 = vmatmul.bf16.gmra.mxu0 %v1935
    %v2048 = vpop.f32.mrf.mxu0
    %v2049 = vadd.f32 %v2020, %v2048
    %v2050 = vpop.f32.mrf.mxu0
    %v2051 = vadd.f32 %v2022, %v2050
    %2052 = vmatmul.bf16.gmra.mxu0 %v1939
    %v2053 = vpop.f32.mrf.mxu0
    %v2054 = vadd.f32 %v2025, %v2053
    %v2055 = vpop.f32.mrf.mxu0
    %v2056 = vadd.f32 %v2027, %v2055
    %2057 = vmatmul.bf16.gmra.mxu0 %v1943
    %v2058 = vpop.f32.mrf.mxu0
    %v2059 = vadd.f32 %v2030, %v2058
    %v2060 = vpop.f32.mrf.mxu0
    %v2061 = vadd.f32 %v2032, %v2060
    %2062 = vmatmul.bf16.gmra.mxu0 %v1947
    %v2063 = vpop.f32.mrf.mxu0
    %v2064 = vadd.f32 %v2035, %v2063
    %v2065 = vpop.f32.mrf.mxu0
    %v2066 = vadd.f32 %v2037, %v2065
    %2067 = vdwg.mxu0
    %2068 = vmatpush.bf16.msra.mxu0 %v1980
    %2069 = vmatpush.bf16.msra.mxu0 %v1979
    %2070 = vmatpush.bf16.msra.mxu0 %v1978
    %2071 = vmatpush.bf16.msra.mxu0 %v1977
    %2072 = vmatpush.bf16.msra.mxu0 %v1976
    %2073 = vmatpush.bf16.msra.mxu0 %v1975
    %2074 = vmatpush.bf16.msra.mxu0 %v1974
    %2075 = vmatpush.bf16.msra.mxu0 %v1973
    %2076 = vmatmul.bf16.gmra.mxu0 %v1936
    %v2077 = vpop.f32.mrf.mxu0
    %v2078 = vadd.f32 %v2049, %v2077
    %v2079 = vpop.f32.mrf.mxu0
    %v2080 = vadd.f32 %v2051, %v2079
    %2081 = vmatmul.bf16.gmra.mxu0 %v1940
    %v2082 = vpop.f32.mrf.mxu0
    %v2083 = vadd.f32 %v2054, %v2082
    %v2084 = vpop.f32.mrf.mxu0
    %v2085 = vadd.f32 %v2056, %v2084
    %2086 = vmatmul.bf16.gmra.mxu0 %v1944
    %v2087 = vpop.f32.mrf.mxu0
    %v2088 = vadd.f32 %v2059, %v2087
    %v2089 = vpop.f32.mrf.mxu0
    %v2090 = vadd.f32 %v2061, %v2089
    %2091 = vmatmul.bf16.gmra.mxu0 %v1948
    %v2092 = vpop.f32.mrf.mxu0
    %v2093 = vadd.f32 %v2064, %v2092
    %v2094 = vpop.f32.mrf.mxu0
    %v2095 = vadd.f32 %v2066, %v2094
    %2096 = vdwg.mxu0
    %v2097 = vpack.c.bf16 %v2080, %v2078
    %v2098 = vpack.c.bf16 %v2085, %v2083
    %v2099 = vpack.c.bf16 %v2090, %v2088
    %v2100 = vpack.c.bf16 %v2095, %v2093
    %s2101 = scalar_lea.vmem %s3, 128
    %v2102 = vld [vmem:[%s2101] sm:$0xf]
    %v2103 = vld [vmem:[%s2101 + $0x4] sm:$0xf]
    %v2104 = vld [vmem:[%s2101 + $0x8] sm:$0xf]
    %v2105 = vld [vmem:[%s2101 + $0xc] sm:$0xf]
    %v2106 = vld [vmem:[%s2101 + $0x10] sm:$0xf]
    %v2107 = vld [vmem:[%s2101 + $0x14] sm:$0xf]
    %v2108 = vld [vmem:[%s2101 + $0x18] sm:$0xf]
    %v2109 = vld [vmem:[%s2101 + $0x1c] sm:$0xf]
    %v2110 = vld [vmem:[%s2101 + $0x20] sm:$0xf]
    %v2111 = vld [vmem:[%s2101 + $0x24] sm:$0xf]
    %v2112 = vld [vmem:[%s2101 + $0x28] sm:$0xf]
    %v2113 = vld [vmem:[%s2101 + $0x2c] sm:$0xf]
    %v2114 = vld [vmem:[%s2101 + $0x30] sm:$0xf]
    %v2115 = vld [vmem:[%s2101 + $0x34] sm:$0xf]
    %v2116 = vld [vmem:[%s2101 + $0x38] sm:$0xf]
    %v2117 = vld [vmem:[%s2101 + $0x3c] sm:$0xf]
    %v2118 = vperm.slane %v22, 3
    %v2135 = vunpack.c.l.b16 %v2102
    %v2136 = vunpack.c.l.b16 %v2103
    %v2137 = vunpack.c.l.b16 %v2104
    %v2138 = vunpack.c.l.b16 %v2105
    %v2139 = vunpack.c.l.b16 %v2106
    %v2140 = vunpack.c.l.b16 %v2107
    %v2141 = vunpack.c.l.b16 %v2108
    %v2142 = vunpack.c.l.b16 %v2109
    %v2143 = vunpack.c.l.b16 %v2110
    %v2144 = vunpack.c.l.b16 %v2111
    %v2145 = vunpack.c.l.b16 %v2112
    %v2146 = vunpack.c.l.b16 %v2113
    %v2147 = vunpack.c.l.b16 %v2114
    %v2148 = vunpack.c.l.b16 %v2115
    %v2149 = vunpack.c.l.b16 %v2116
    %v2150 = vunpack.c.l.b16 %v2117
    %v2151 = vpack.c.b16 %v2136, %v2135
    %v2152 = vpack.c.b16 %v2138, %v2137
    %v2153 = vpack.c.b16 %v2140, %v2139
    %v2154 = vpack.c.b16 %v2142, %v2141
    %v2155 = vpack.c.b16 %v2144, %v2143
    %v2156 = vpack.c.b16 %v2146, %v2145
    %v2157 = vpack.c.b16 %v2148, %v2147
    %v2158 = vpack.c.b16 %v2150, %v2149
    %2167 = vmatpush.bf16.msra.mxu0 %v2158
    %2168 = vmatpush.bf16.msra.mxu0 %v2157
    %2169 = vmatpush.bf16.msra.mxu0 %v2156
    %2170 = vmatpush.bf16.msra.mxu0 %v2155
    %2171 = vmatpush.bf16.msra.mxu0 %v2154
    %2172 = vmatpush.bf16.msra.mxu0 %v2153
    %2173 = vmatpush.bf16.msra.mxu0 %v2152
    %2174 = vmatpush.bf16.msra.mxu0 %v2151
    %2175 = vmatmul.bf16.gmra.mxu0 %v2097
    %v2176 = vpop.f32.mrf.mxu0
    %v2177 = vadd.f32 %v2118, %v2176
    %v2178 = vpop.f32.mrf.mxu0
    %v2179 = vadd.f32 %v2118, %v2178
    %2180 = vmatmul.bf16.gmra.mxu0 %v2098
    %v2181 = vpop.f32.mrf.mxu0
    %v2182 = vadd.f32 %v2118, %v2181
    %v2183 = vpop.f32.mrf.mxu0
    %v2184 = vadd.f32 %v2118, %v2183
    %2185 = vmatmul.bf16.gmra.mxu0 %v2099
    %v2186 = vpop.f32.mrf.mxu0
    %v2187 = vadd.f32 %v2118, %v2186
    %v2188 = vpop.f32.mrf.mxu0
    %v2189 = vadd.f32 %v2118, %v2188
    %2190 = vmatmul.bf16.gmra.mxu0 %v2100
    %v2191 = vpop.f32.mrf.mxu0
    %v2192 = vadd.f32 %v2118, %v2191
    %v2193 = vpop.f32.mrf.mxu0
    %v2194 = vadd.f32 %v2118, %v2193
    %2195 = vdwg.mxu0
    %v2196 = vpack.c.bf16 %v2179, %v2177
    %v2197 = vpack.c.bf16 %v2184, %v2182
    %v2198 = vpack.c.bf16 %v2189, %v2187
    %v2199 = vpack.c.bf16 %v2194, %v2192
    %s2200 = scalar_lea.vmem %s3, 192
    %v2201 = vld [vmem:[%s2200] sm:$0xf]
    %v2202 = vld [vmem:[%s2200 + $0x4] sm:$0xf]
    %v2203 = vld [vmem:[%s2200 + $0x8] sm:$0xf]
    %v2204 = vld [vmem:[%s2200 + $0xc] sm:$0xf]
    %v2205 = vld [vmem:[%s2200 + $0x10] sm:$0xf]
    %v2206 = vld [vmem:[%s2200 + $0x14] sm:$0xf]
    %v2207 = vld [vmem:[%s2200 + $0x18] sm:$0xf]
    %v2208 = vld [vmem:[%s2200 + $0x1c] sm:$0xf]
    %v2209 = vld [vmem:[%s2200 + $0x20] sm:$0xf]
    %v2210 = vld [vmem:[%s2200 + $0x24] sm:$0xf]
    %v2211 = vld [vmem:[%s2200 + $0x28] sm:$0xf]
    %v2212 = vld [vmem:[%s2200 + $0x2c] sm:$0xf]
    %v2213 = vld [vmem:[%s2200 + $0x30] sm:$0xf]
    %v2214 = vld [vmem:[%s2200 + $0x34] sm:$0xf]
    %v2215 = vld [vmem:[%s2200 + $0x38] sm:$0xf]
    %v2216 = vld [vmem:[%s2200 + $0x3c] sm:$0xf]
    %v2217 = vperm.slane %v22, 4
    %v2234 = vunpack.c.l.b16 %v2201
    %v2235 = vunpack.c.l.b16 %v2202
    %v2236 = vunpack.c.l.b16 %v2203
    %v2237 = vunpack.c.l.b16 %v2204
    %v2238 = vunpack.c.l.b16 %v2205
    %v2239 = vunpack.c.l.b16 %v2206
    %v2240 = vunpack.c.l.b16 %v2207
    %v2241 = vunpack.c.l.b16 %v2208
    %v2242 = vunpack.c.l.b16 %v2209
    %v2243 = vunpack.c.l.b16 %v2210
    %v2244 = vunpack.c.l.b16 %v2211
    %v2245 = vunpack.c.l.b16 %v2212
    %v2246 = vunpack.c.l.b16 %v2213
    %v2247 = vunpack.c.l.b16 %v2214
    %v2248 = vunpack.c.l.b16 %v2215
    %v2249 = vunpack.c.l.b16 %v2216
    %v2250 = vpack.c.b16 %v2235, %v2234
    %v2251 = vpack.c.b16 %v2237, %v2236
    %v2252 = vpack.c.b16 %v2239, %v2238
    %v2253 = vpack.c.b16 %v2241, %v2240
    %v2254 = vpack.c.b16 %v2243, %v2242
    %v2255 = vpack.c.b16 %v2245, %v2244
    %v2256 = vpack.c.b16 %v2247, %v2246
    %v2257 = vpack.c.b16 %v2249, %v2248
    %2266 = vmatpush.bf16.msra.mxu0 %v2257
    %2267 = vmatpush.bf16.msra.mxu0 %v2256
    %2268 = vmatpush.bf16.msra.mxu0 %v2255
    %2269 = vmatpush.bf16.msra.mxu0 %v2254
    %2270 = vmatpush.bf16.msra.mxu0 %v2253
    %2271 = vmatpush.bf16.msra.mxu0 %v2252
    %2272 = vmatpush.bf16.msra.mxu0 %v2251
    %2273 = vmatpush.bf16.msra.mxu0 %v2250
    %2274 = vmatmul.bf16.gmra.mxu0 %v2196
    %v2275 = vpop.f32.mrf.mxu0
    %v2276 = vadd.f32 %v2217, %v2275
    %v2277 = vpop.f32.mrf.mxu0
    %v2278 = vadd.f32 %v2217, %v2277
    %2279 = vmatmul.bf16.gmra.mxu0 %v2197
    %v2280 = vpop.f32.mrf.mxu0
    %v2281 = vadd.f32 %v2217, %v2280
    %v2282 = vpop.f32.mrf.mxu0
    %v2283 = vadd.f32 %v2217, %v2282
    %2284 = vmatmul.bf16.gmra.mxu0 %v2198
    %v2285 = vpop.f32.mrf.mxu0
    %v2286 = vadd.f32 %v2217, %v2285
    %v2287 = vpop.f32.mrf.mxu0
    %v2288 = vadd.f32 %v2217, %v2287
    %2289 = vmatmul.bf16.gmra.mxu0 %v2199
    %v2290 = vpop.f32.mrf.mxu0
    %v2291 = vadd.f32 %v2217, %v2290
    %v2292 = vpop.f32.mrf.mxu0
    %v2293 = vadd.f32 %v2217, %v2292
    %2294 = vdwg.mxu0
    %v2295 = vmax.f32 %v2276, 0.0
    %v2296 = vmax.f32 %v2278, 0.0
    %v2297 = vmax.f32 %v2281, 0.0
    %v2298 = vmax.f32 %v2283, 0.0
    %v2299 = vmax.f32 %v2286, 0.0
    %v2300 = vmax.f32 %v2288, 0.0
    %v2301 = vmax.f32 %v2291, 0.0
    %v2302 = vmax.f32 %v2293, 0.0
    %v2303 = vpack.c.bf16 %v2296, %v2295
    %v2304 = vpack.c.bf16 %v2298, %v2297
    %v2305 = vpack.c.bf16 %v2300, %v2299
    %v2306 = vpack.c.bf16 %v2302, %v2301
    %s2307 = scalar_lea.vmem %s3, 256
    %v2308 = vld [vmem:[%s2307] sm:$0xf]
    %v2309 = vld [vmem:[%s2307 + $0x4] sm:$0xf]
    %v2310 = vld [vmem:[%s2307 + $0x8] sm:$0xf]
    %v2311 = vld [vmem:[%s2307 + $0xc] sm:$0xf]
    %v2312 = vld [vmem:[%s2307 + $0x10] sm:$0xf]
    %v2313 = vld [vmem:[%s2307 + $0x14] sm:$0xf]
    %v2314 = vld [vmem:[%s2307 + $0x18] sm:$0xf]
    %v2315 = vld [vmem:[%s2307 + $0x1c] sm:$0xf]
    %v2316 = vld [vmem:[%s2307 + $0x20] sm:$0xf]
    %v2317 = vld [vmem:[%s2307 + $0x24] sm:$0xf]
    %v2318 = vld [vmem:[%s2307 + $0x28] sm:$0xf]
    %v2319 = vld [vmem:[%s2307 + $0x2c] sm:$0xf]
    %v2320 = vld [vmem:[%s2307 + $0x30] sm:$0xf]
    %v2321 = vld [vmem:[%s2307 + $0x34] sm:$0xf]
    %v2322 = vld [vmem:[%s2307 + $0x38] sm:$0xf]
    %v2323 = vld [vmem:[%s2307 + $0x3c] sm:$0xf]
    %v2324 = vperm.slane %v22, 5
    %v2341 = vunpack.c.l.b16 %v2308
    %v2342 = vunpack.c.l.b16 %v2309
    %v2343 = vunpack.c.l.b16 %v2310
    %v2344 = vunpack.c.l.b16 %v2311
    %v2345 = vunpack.c.l.b16 %v2312
    %v2346 = vunpack.c.l.b16 %v2313
    %v2347 = vunpack.c.l.b16 %v2314
    %v2348 = vunpack.c.l.b16 %v2315
    %v2349 = vunpack.c.l.b16 %v2316
    %v2350 = vunpack.c.l.b16 %v2317
    %v2351 = vunpack.c.l.b16 %v2318
    %v2352 = vunpack.c.l.b16 %v2319
    %v2353 = vunpack.c.l.b16 %v2320
    %v2354 = vunpack.c.l.b16 %v2321
    %v2355 = vunpack.c.l.b16 %v2322
    %v2356 = vunpack.c.l.b16 %v2323
    %v2357 = vpack.c.b16 %v2342, %v2341
    %v2358 = vpack.c.b16 %v2344, %v2343
    %v2359 = vpack.c.b16 %v2346, %v2345
    %v2360 = vpack.c.b16 %v2348, %v2347
    %v2361 = vpack.c.b16 %v2350, %v2349
    %v2362 = vpack.c.b16 %v2352, %v2351
    %v2363 = vpack.c.b16 %v2354, %v2353
    %v2364 = vpack.c.b16 %v2356, %v2355
    %2373 = vmatpush.bf16.msra.mxu0 %v2364
    %2374 = vmatpush.bf16.msra.mxu0 %v2363
    %2375 = vmatpush.bf16.msra.mxu0 %v2362
    %2376 = vmatpush.bf16.msra.mxu0 %v2361
    %2377 = vmatpush.bf16.msra.mxu0 %v2360
    %2378 = vmatpush.bf16.msra.mxu0 %v2359
    %2379 = vmatpush.bf16.msra.mxu0 %v2358
    %2380 = vmatpush.bf16.msra.mxu0 %v2357
    %2381 = vmatmul.bf16.gmra.mxu0 %v2303
    %v2382 = vpop.f32.mrf.mxu0
    %v2383 = vadd.f32 %v2324, %v2382
    %v2384 = vpop.f32.mrf.mxu0
    %v2385 = vadd.f32 %v2324, %v2384
    %2386 = vmatmul.bf16.gmra.mxu0 %v2304
    %v2387 = vpop.f32.mrf.mxu0
    %v2388 = vadd.f32 %v2324, %v2387
    %v2389 = vpop.f32.mrf.mxu0
    %v2390 = vadd.f32 %v2324, %v2389
    %2391 = vmatmul.bf16.gmra.mxu0 %v2305
    %v2392 = vpop.f32.mrf.mxu0
    %v2393 = vadd.f32 %v2324, %v2392
    %v2394 = vpop.f32.mrf.mxu0
    %v2395 = vadd.f32 %v2324, %v2394
    %2396 = vmatmul.bf16.gmra.mxu0 %v2306
    %v2397 = vpop.f32.mrf.mxu0
    %v2398 = vadd.f32 %v2324, %v2397
    %v2399 = vpop.f32.mrf.mxu0
    %v2400 = vadd.f32 %v2324, %v2399
    %2401 = vdwg.mxu0
    %2402 = vst [vmem:[#allocation2] sm:$0xff] %v2383
    %2403 = vst [vmem:[#allocation2 + $0x8] sm:$0xff] %v2385
    %2404 = vst [vmem:[#allocation2 + $0x10] sm:$0xff] %v2388
    %2405 = vst [vmem:[#allocation2 + $0x18] sm:$0xff] %v2390
    %2406 = vst [vmem:[#allocation2 + $0x20] sm:$0xff] %v2393
    %2407 = vst [vmem:[#allocation2 + $0x28] sm:$0xff] %v2395
    %2408 = vst [vmem:[#allocation2 + $0x30] sm:$0xff] %v2398
    %2409 = vst [vmem:[#allocation2 + $0x38] sm:$0xff] %v2400
    // Predicated region
    $region22: #{tpu_custom_call.1} parent=1 // pred_check
      _
    $region23: #{tpu_custom_call.1} parent=1 // pred_check_branch
      %2411 = sbr.rel (0) target = $region25
    $region24: #{tpu_custom_call.1} parent=1 // pred_region
      %2413 = vsyncadd [#allocation3], 0
      %s2414 = sshll.u32 [#allocation2], 4
      %s2415 = int_to_ptr.vmem [resolvable:$true] %s2414
      %s2416 = sshll.u32 %s5, 4
      %s2417 = int_to_ptr.hbm [resolvable:$true] %s2416
      %2422 = dma.vmem_to_hbm [thread:$0]  %s2415, 1024, %s2417, [#allocation3], 128, 128, 8
    $region25: #{tpu_custom_call.1} parent=1 // pred_fallthru
      _
    // Predicated region
    $region26: #{tpu_custom_call.1} parent=1 // pred_check
      _
    $region27: #{tpu_custom_call.1} parent=1 // pred_check_branch
      %2424 = sbr.rel (0) target = $region29
    $region28: #{tpu_custom_call.1} parent=1 // pred_region
      %2426 = dma.done [#allocation3], 1024
    $region29: #{tpu_custom_call.1} parent=1 // pred_fallthru
      _
    %2427 = vsyncpa [#allocation3], 1

</llo_original>
